<compile_context>
chip_gen: v7x
topology: tpu7x:2x2x1
jax: 0.10.0
libtpu: 0.0.40
codegen_flags: <defaults>
</compile_context>

<pallas_src>
import functools

import jax
import jax.numpy as jnp
from jax import lax
from jax.experimental import pallas as pl
from jax.experimental.pallas import tpu as pltpu


def _round_up(n, m):
    return ((n + m - 1) // m) * m


# ---------------------------------------------------------------------------
# Kernels
# ---------------------------------------------------------------------------

def _lstm_fc_kernel_compact(T, Bp, H, Hg,
                            x_ref, wih_ref, whh_ref, b_ref, wfc_ref, bfc_ref,
                            out_ref, xproj_ref):
    """Compact-gate path (4*Hg == 128, used when H <= 32).

    x_ref:     (T*Bp, D)     flattened time-major inputs
    wih_ref:   (D, 4*Hg)     input->gate weights (gate cols zero-padded H->Hg)
    whh_ref:   (4*Hg, 4*Hg)  hidden->gate weights (K rows >= H are zero)
    b_ref:     (1, 4*Hg)     combined bias (b_ih + b_hh)
    wfc_ref:   (4*Hg, Op)    fc weight (rows >= H are zero)
    bfc_ref:   (1, Op)
    out_ref:   (Bp, Op)
    xproj_ref: (T*Bp, 4*Hg)  VMEM scratch (hoisted input projection)

    h/c live as (Bp, 128) vregs; lanes [0, H) meaningful, rest exactly 0.
    """
    GW = 4 * Hg  # gate width == 128 == h/c lane width

    # Input projection for ALL timesteps in one MXU call (off the serial path).
    xproj_ref[...] = (
        jnp.dot(x_ref[...], wih_ref[...], preferred_element_type=jnp.float32)
        + b_ref[...])

    lane = lax.broadcasted_iota(jnp.int32, (Bp, GW), 1)
    g_slot = (lane >= 2 * Hg) & (lane < 3 * Hg)     # cell-candidate gate: tanh
    keep = (lane < H).astype(jnp.float32)           # valid h/c lanes

    def step(t, carry):
        h, c = carry
        start = pl.multiple_of(t * Bp, Bp)
        gates = (xproj_ref[pl.ds(start, Bp), :]
                 + jnp.dot(h, whh_ref[...], preferred_element_type=jnp.float32))
        # Activations on the whole 128-lane vreg: 1 sigmoid + 1 tanh EUP pass.
        act = jnp.where(g_slot, jnp.tanh(gates), jax.nn.sigmoid(gates))
        # PyTorch gate order i, f, g, o; re-align f/g/o to lanes [0, Hg) on XLU.
        i_g = act                                    # lanes [0, Hg)
        f_g = pltpu.roll(act, GW - 1 * Hg, 1)        # [Hg, 2Hg)  -> [0, Hg)
        g_g = pltpu.roll(act, GW - 2 * Hg, 1)        # [2Hg, 3Hg) -> [0, Hg)
        o_g = pltpu.roll(act, GW - 3 * Hg, 1)        # [3Hg, 4Hg) -> [0, Hg)
        c = (f_g * c + i_g * g_g) * keep             # zero junk lanes >= H
        h = o_g * jnp.tanh(c)                        # lanes >= H: tanh(0)=0
        return h, c

    h0 = jnp.zeros((Bp, GW), jnp.float32)
    c0 = jnp.zeros((Bp, GW), jnp.float32)
    h, _ = lax.fori_loop(0, T, step, (h0, c0), unroll=True)

    # fc on the last hidden state; lane-dense (Bp, Op) unmasked store.
    out_ref[...] = (jnp.dot(h, wfc_ref[...], preferred_element_type=jnp.float32)
                    + bfc_ref[...]).astype(out_ref.dtype)


def _lstm_fc_kernel_wide(T, Bp, Hp,
                         x_ref, wih_ref, whh_ref, b_ref, wfc_ref, bfc_ref,
                         out_ref, xproj_ref):
    """Fallback path for H > 32: each gate zero-padded to Hp = round_up(H,128)
    lanes so every gate slice is a full, lane-aligned vreg."""
    xproj_ref[...] = (
        jnp.dot(x_ref[...], wih_ref[...], preferred_element_type=jnp.float32)
        + b_ref[...])

    def step(t, carry):
        h, c = carry
        start = pl.multiple_of(t * Bp, Bp)
        gates = (xproj_ref[pl.ds(start, Bp), :]
                 + jnp.dot(h, whh_ref[...], preferred_element_type=jnp.float32))
        i_g = jax.nn.sigmoid(gates[:, 0 * Hp:1 * Hp])
        f_g = jax.nn.sigmoid(gates[:, 1 * Hp:2 * Hp])
        g_g = jnp.tanh(gates[:, 2 * Hp:3 * Hp])
        o_g = jax.nn.sigmoid(gates[:, 3 * Hp:4 * Hp])
        c = f_g * c + i_g * g_g
        h = o_g * jnp.tanh(c)
        return h, c

    h0 = jnp.zeros((Bp, Hp), jnp.float32)
    c0 = jnp.zeros((Bp, Hp), jnp.float32)
    h, _ = lax.fori_loop(0, T, step, (h0, c0), unroll=True)

    out_ref[...] = (jnp.dot(h, wfc_ref[...], preferred_element_type=jnp.float32)
                    + bfc_ref[...]).astype(out_ref.dtype)


# ---------------------------------------------------------------------------
# One-time model init (weight padding hoisted here) + jitted forward closure
# ---------------------------------------------------------------------------

def make_task_predictor(w_ih, w_hh, b_ih, b_hh, w_fc, b_fc):
    """w_ih: (D, 4H), w_hh: (H, 4H), b_ih/b_hh: (4H,), w_fc: (H, O), b_fc: (O,)
    (PyTorch weights pre-transposed for x @ W).  Returns forward(x) -> (B, O)."""
    f32 = jnp.float32
    D = w_ih.shape[0]
    H = w_hh.shape[0]
    O = w_fc.shape[1]
    Op = _round_up(O, 128)
    b_gates = (b_ih + b_hh).astype(f32)

    compact = H <= 32
    if compact:
        hpad = 32            # per-gate width -> 4*hpad == 128 == one vreg
    else:
        hpad = _round_up(H, 128)
    GW = 4 * hpad            # gate (and xproj) width
    Kp = GW if compact else hpad   # h/c lane width == w_hh K rows

    def pad_gate_cols(w):    # (rows, 4H) -> (rows, 4*hpad), zero-padded cols
        r = w.shape[0]
        w4 = w.astype(f32).reshape(r, 4, H)
        return (jnp.zeros((r, 4, hpad), f32).at[:, :, :H].set(w4)
                .reshape(r, 4 * hpad))

    # Padded f32 copies built ONCE (not in the per-call hot path).
    wih_p = pad_gate_cols(w_ih)                                     # (D, GW)
    whh_p = jnp.zeros((Kp, GW), f32).at[:H, :].set(pad_gate_cols(w_hh))
    b_p = pad_gate_cols(b_gates.reshape(1, 4 * H))                  # (1, GW)
    wfc_p = jnp.zeros((Kp, Op), f32).at[:H, :O].set(w_fc.astype(f32))
    bfc_p = jnp.zeros((1, Op), f32).at[0, :O].set(b_fc.astype(f32).reshape(O))

    @jax.jit
    def forward(x_btd):
        B, T, Dx = x_btd.shape
        assert Dx == D
        Bp = _round_up(B, 8)   # sublane alignment

        # Time-major, batch zero-padded, flattened to (T*Bp, D) so the whole
        # input projection is a single in-kernel MXU matmul.
        x_tbd = jnp.transpose(x_btd, (1, 0, 2)).astype(f32)
        x_pad = (jnp.zeros((T, Bp, D), f32).at[:, :B, :].set(x_tbd)
                 .reshape(T * Bp, D))

        if compact:
            kernel = functools.partial(_lstm_fc_kernel_compact, T, Bp, H, hpad)
        else:
            kernel = functools.partial(_lstm_fc_kernel_wide, T, Bp, hpad)

        vmem = pl.BlockSpec(memory_space=pltpu.MemorySpace.VMEM)
        out_p = pl.pallas_call(
            kernel,
            out_shape=jax.ShapeDtypeStruct((Bp, Op), f32),
            in_specs=[vmem] * 6,           # whole arrays in VMEM, no grid
            out_specs=vmem,
            scratch_shapes=[pltpu.VMEM((T * Bp, GW), f32)],  # hoisted x-proj
        )(x_pad, wih_p, whh_p, b_p, wfc_p, bfc_p)

        return out_p[:B, :O]

    return forward


# ---------------------------------------------------------------------------
# Pure-JAX reference (PyTorch nn.LSTM + Linear semantics)
# ---------------------------------------------------------------------------

def reference_forward(x_btd, w_ih, w_hh, b_gates, w_fc, b_fc):
    H = w_hh.shape[0]

    def step(carry, x_t):
        h, c = carry
        gates = x_t @ w_ih + h @ w_hh + b_gates
        i = jax.nn.sigmoid(gates[:, 0 * H:1 * H])
        f = jax.nn.sigmoid(gates[:, 1 * H:2 * H])
        g = jnp.tanh(gates[:, 2 * H:3 * H])
        o = jax.nn.sigmoid(gates[:, 3 * H:4 * H])
        c = f * c + i * g
        h = o * jnp.tanh(c)
        return (h, c), None

    B = x_btd.shape[0]
    h0 = jnp.zeros((B, H), jnp.float32)
    c0 = jnp.zeros((B, H), jnp.float32)
    (h_n, _), _ = lax.scan(step, (h0, c0), jnp.transpose(x_btd, (1, 0, 2)))
    return h_n @ w_fc + b_fc


if __name__ == "__main__":
    # Small shapes implied by the module: x is (batch, seq, input_dim).
    B, T, D, H, O = 2, 8, 16, 32, 4

    key = jax.random.PRNGKey(0)
    kx, k1, k2, k3, k4, k5, k6 = jax.random.split(key, 7)

    scale = 1.0 / jnp.sqrt(jnp.float32(H))  # PyTorch-style uniform init bound

    x = jax.random.normal(kx, (B, T, D), dtype=jnp.float32)

    # nn.LSTM params (weight_ih_l0 (4H,D), weight_hh_l0 (4H,H), biases (4H,))
    # stored pre-transposed for x @ W; nn.Linear (O,H)/(O,) likewise.
    w_ih = jax.random.uniform(k1, (D, 4 * H), jnp.float32, -scale, scale)
    w_hh = jax.random.uniform(k2, (H, 4 * H), jnp.float32, -scale, scale)
    b_ih = jax.random.uniform(k3, (4 * H,), jnp.float32, -scale, scale)
    b_hh = jax.random.uniform(k4, (4 * H,), jnp.float32, -scale, scale)
    w_fc = jax.random.uniform(k5, (H, O), jnp.float32, -scale, scale)
    b_fc = jax.random.uniform(k6, (O,), jnp.float32, -scale, scale)

    # One-time init (all weight padding happens here, outside the hot path).
    forward = make_task_predictor(w_ih, w_hh, b_ih, b_hh, w_fc, b_fc)

    out = forward(x)
    out = jax.block_until_ready(out)

    ref = reference_forward(x, w_ih, w_hh, b_ih + b_hh, w_fc, b_fc)
    assert out.shape == (B, O)
    assert jnp.allclose(out, ref, atol=1e-5, rtol=1e-5)

    print("KERNEL_OK")
</pallas_src>

<mosaic_0001>
module attributes {stable_mosaic.version = 11 : i64} {
  func.func @_lstm_fc_kernel_compact(%arg0: memref<64x16xf32, #tpu.memory_space<vmem>>, %arg1: memref<16x128xf32, #tpu.memory_space<vmem>>, %arg2: memref<128x128xf32, #tpu.memory_space<vmem>>, %arg3: memref<1x128xf32, #tpu.memory_space<vmem>>, %arg4: memref<128x128xf32, #tpu.memory_space<vmem>>, %arg5: memref<1x128xf32, #tpu.memory_space<vmem>>, %arg6: memref<8x128xf32, #tpu.memory_space<vmem>>, %arg7: memref<64x128xf32, #tpu.memory_space<vmem>>) attributes {dimension_semantics = [], scalar_prefetch = 0 : i64, scratch_operands = 1 : i64, tpu.core_type = #tpu.core_type<tc>} {
    %c0 = arith.constant 0 : index
    %c0_0 = arith.constant 0 : index
    %0 = vector.load %arg0[%c0, %c0_0] : memref<64x16xf32, #tpu.memory_space<vmem>>, vector<64x16xf32>
    %c0_1 = arith.constant 0 : index
    %c0_2 = arith.constant 0 : index
    %1 = vector.load %arg1[%c0_1, %c0_2] : memref<16x128xf32, #tpu.memory_space<vmem>>, vector<16x128xf32>
    %cst = arith.constant dense<0.000000e+00> : vector<64x128xf32>
    %2 = tpu.matmul %0, %1, %cst {dimension_numbers = #tpu.dot_dimension_numbers<[1], [0], [0], [1], [0, 0, 1, 1], [], []>} : vector<64x16xf32>, vector<16x128xf32>, vector<64x128xf32> -> vector<64x128xf32>
    %c0_3 = arith.constant 0 : index
    %c0_4 = arith.constant 0 : index
    %3 = vector.load %arg3[%c0_3, %c0_4] : memref<1x128xf32, #tpu.memory_space<vmem>>, vector<1x128xf32>
    %4 = vector.broadcast %3 : vector<1x128xf32> to vector<64x128xf32>
    %5 = arith.addf %2, %4 : vector<64x128xf32>
    %c0_5 = arith.constant 0 : index
    %c0_6 = arith.constant 0 : index
    %6 = vector.load %arg7[%c0_5, %c0_6] : memref<64x128xf32, #tpu.memory_space<vmem>>, vector<64x128xf32>
    tpu.vector_store %arg7[%c0_5, %c0_6], %5 {strides = array<i32>} : memref<64x128xf32, #tpu.memory_space<vmem>>, vector<64x128xf32>,
    %7 = tpu.iota {dimensions = array<i32: 1>} : vector<8x128xi32>
    %c64_i32 = arith.constant 64 : i32
    %8 = vector.broadcast %c64_i32 : i32 to vector<8x128xi32>
    %9 = arith.cmpi sge, %7, %8 : vector<8x128xi32>
    %c96_i32 = arith.constant 96 : i32
    %10 = vector.broadcast %c96_i32 : i32 to vector<8x128xi32>
    %11 = arith.cmpi slt, %7, %10 : vector<8x128xi32>
    %12 = arith.andi %9, %11 : vector<8x128xi1>
    %c32_i32 = arith.constant 32 : i32
    %13 = vector.broadcast %c32_i32 : i32 to vector<8x128xi32>
    %14 = arith.cmpi slt, %7, %13 : vector<8x128xi32>
    %15 = arith.extui %14 : vector<8x128xi1> to vector<8x128xi32>
    %16 = arith.sitofp %15 : vector<8x128xi32> to vector<8x128xf32>
    %cst_7 = arith.constant 0.000000e+00 : f32
    %17 = vector.broadcast %cst_7 : f32 to vector<8x128xf32>
    %cst_8 = arith.constant 0.000000e+00 : f32
    %18 = vector.broadcast %cst_8 : f32 to vector<8x128xf32>
    %c0_i32 = arith.constant 0 : i32
    %c8_i32 = arith.constant 8 : i32
    %19 = arith.muli %c0_i32, %c8_i32 : i32
    %20 = tpu.assume_multiple %19, 8 : i32
    %21 = arith.index_cast %20 : i32 to index
    %c0_9 = arith.constant 0 : index
    %22 = vector.load %arg7[%21, %c0_9] : memref<64x128xf32, #tpu.memory_space<vmem>>, vector<8x128xf32>
    %c0_10 = arith.constant 0 : index
    %c0_11 = arith.constant 0 : index
    %23 = vector.load %arg2[%c0_10, %c0_11] : memref<128x128xf32, #tpu.memory_space<vmem>>, vector<128x128xf32>
    %cst_12 = arith.constant dense<0.000000e+00> : vector<8x128xf32>
    %24 = tpu.matmul %17, %23, %cst_12 {dimension_numbers = #tpu.dot_dimension_numbers<[1], [0], [0], [1], [0, 0, 1, 1], [], []>} : vector<8x128xf32>, vector<128x128xf32>, vector<8x128xf32> -> vector<8x128xf32>
    %25 = arith.addf %22, %24 : vector<8x128xf32>
    %26 = math.tanh %25 : vector<8x128xf32>
    %27 = arith.negf %25 : vector<8x128xf32>
    %28 = math.exp %27 : vector<8x128xf32>
    %cst_13 = arith.constant 1.000000e+00 : f32
    %29 = vector.broadcast %cst_13 : f32 to vector<8x128xf32>
    %30 = arith.addf %29, %28 : vector<8x128xf32>
    %31 = arith.divf %29, %30 : vector<8x128xf32>
    %32 = arith.select %12, %26, %31 : vector<8x128xi1>, vector<8x128xf32>
    %c96_i32_14 = arith.constant 96 : i32
    %33 = tpu.dynamic_rotate %32 by %c96_i32_14 dim 1 : vector<8x128xf32>, i32 -> vector<8x128xf32>
    %c64_i32_15 = arith.constant 64 : i32
    %34 = tpu.dynamic_rotate %32 by %c64_i32_15 dim 1 : vector<8x128xf32>, i32 -> vector<8x128xf32>
    %c32_i32_16 = arith.constant 32 : i32
    %35 = tpu.dynamic_rotate %32 by %c32_i32_16 dim 1 : vector<8x128xf32>, i32 -> vector<8x128xf32>
    %36 = arith.mulf %33, %18 : vector<8x128xf32>
    %37 = arith.mulf %32, %34 : vector<8x128xf32>
    %38 = arith.addf %36, %37 : vector<8x128xf32>
    %39 = arith.mulf %38, %16 : vector<8x128xf32>
    %40 = math.tanh %39 : vector<8x128xf32>
    %41 = arith.mulf %35, %40 : vector<8x128xf32>
    %c1_i32 = arith.constant 1 : i32
    %c8_i32_17 = arith.constant 8 : i32
    %42 = arith.muli %c1_i32, %c8_i32_17 : i32
    %43 = tpu.assume_multiple %42, 8 : i32
    %44 = arith.index_cast %43 : i32 to index
    %c0_18 = arith.constant 0 : index
    %45 = vector.load %arg7[%44, %c0_18] : memref<64x128xf32, #tpu.memory_space<vmem>>, vector<8x128xf32>
    %c0_19 = arith.constant 0 : index
    %c0_20 = arith.constant 0 : index
    %46 = vector.load %arg2[%c0_19, %c0_20] : memref<128x128xf32, #tpu.memory_space<vmem>>, vector<128x128xf32>
    %cst_21 = arith.constant dense<0.000000e+00> : vector<8x128xf32>
    %47 = tpu.matmul %41, %46, %cst_21 {dimension_numbers = #tpu.dot_dimension_numbers<[1], [0], [0], [1], [0, 0, 1, 1], [], []>} : vector<8x128xf32>, vector<128x128xf32>, vector<8x128xf32> -> vector<8x128xf32>
    %48 = arith.addf %45, %47 : vector<8x128xf32>
    %49 = math.tanh %48 : vector<8x128xf32>
    %50 = arith.negf %48 : vector<8x128xf32>
    %51 = math.exp %50 : vector<8x128xf32>
    %cst_22 = arith.constant 1.000000e+00 : f32
    %52 = vector.broadcast %cst_22 : f32 to vector<8x128xf32>
    %53 = arith.addf %52, %51 : vector<8x128xf32>
    %54 = arith.divf %52, %53 : vector<8x128xf32>
    %55 = arith.select %12, %49, %54 : vector<8x128xi1>, vector<8x128xf32>
    %c96_i32_23 = arith.constant 96 : i32
    %56 = tpu.dynamic_rotate %55 by %c96_i32_23 dim 1 : vector<8x128xf32>, i32 -> vector<8x128xf32>
    %c64_i32_24 = arith.constant 64 : i32
    %57 = tpu.dynamic_rotate %55 by %c64_i32_24 dim 1 : vector<8x128xf32>, i32 -> vector<8x128xf32>
    %c32_i32_25 = arith.constant 32 : i32
    %58 = tpu.dynamic_rotate %55 by %c32_i32_25 dim 1 : vector<8x128xf32>, i32 -> vector<8x128xf32>
    %59 = arith.mulf %56, %39 : vector<8x128xf32>
    %60 = arith.mulf %55, %57 : vector<8x128xf32>
    %61 = arith.addf %59, %60 : vector<8x128xf32>
    %62 = arith.mulf %61, %16 : vector<8x128xf32>
    %63 = math.tanh %62 : vector<8x128xf32>
    %64 = arith.mulf %58, %63 : vector<8x128xf32>
    %c2_i32 = arith.constant 2 : i32
    %c8_i32_26 = arith.constant 8 : i32
    %65 = arith.muli %c2_i32, %c8_i32_26 : i32
    %66 = tpu.assume_multiple %65, 8 : i32
    %67 = arith.index_cast %66 : i32 to index
    %c0_27 = arith.constant 0 : index
    %68 = vector.load %arg7[%67, %c0_27] : memref<64x128xf32, #tpu.memory_space<vmem>>, vector<8x128xf32>
    %c0_28 = arith.constant 0 : index
    %c0_29 = arith.constant 0 : index
    %69 = vector.load %arg2[%c0_28, %c0_29] : memref<128x128xf32, #tpu.memory_space<vmem>>, vector<128x128xf32>
    %cst_30 = arith.constant dense<0.000000e+00> : vector<8x128xf32>
    %70 = tpu.matmul %64, %69, %cst_30 {dimension_numbers = #tpu.dot_dimension_numbers<[1], [0], [0], [1], [0, 0, 1, 1], [], []>} : vector<8x128xf32>, vector<128x128xf32>, vector<8x128xf32> -> vector<8x128xf32>
    %71 = arith.addf %68, %70 : vector<8x128xf32>
    %72 = math.tanh %71 : vector<8x128xf32>
    %73 = arith.negf %71 : vector<8x128xf32>
    %74 = math.exp %73 : vector<8x128xf32>
    %cst_31 = arith.constant 1.000000e+00 : f32
    %75 = vector.broadcast %cst_31 : f32 to vector<8x128xf32>
    %76 = arith.addf %75, %74 : vector<8x128xf32>
    %77 = arith.divf %75, %76 : vector<8x128xf32>
    %78 = arith.select %12, %72, %77 : vector<8x128xi1>, vector<8x128xf32>
    %c96_i32_32 = arith.constant 96 : i32
    %79 = tpu.dynamic_rotate %78 by %c96_i32_32 dim 1 : vector<8x128xf32>, i32 -> vector<8x128xf32>
    %c64_i32_33 = arith.constant 64 : i32
    %80 = tpu.dynamic_rotate %78 by %c64_i32_33 dim 1 : vector<8x128xf32>, i32 -> vector<8x128xf32>
    %c32_i32_34 = arith.constant 32 : i32
    %81 = tpu.dynamic_rotate %78 by %c32_i32_34 dim 1 : vector<8x128xf32>, i32 -> vector<8x128xf32>
    %82 = arith.mulf %79, %62 : vector<8x128xf32>
    %83 = arith.mulf %78, %80 : vector<8x128xf32>
    %84 = arith.addf %82, %83 : vector<8x128xf32>
    %85 = arith.mulf %84, %16 : vector<8x128xf32>
    %86 = math.tanh %85 : vector<8x128xf32>
    %87 = arith.mulf %81, %86 : vector<8x128xf32>
    %c3_i32 = arith.constant 3 : i32
    %c8_i32_35 = arith.constant 8 : i32
    %88 = arith.muli %c3_i32, %c8_i32_35 : i32
    %89 = tpu.assume_multiple %88, 8 : i32
    %90 = arith.index_cast %89 : i32 to index
    %c0_36 = arith.constant 0 : index
    %91 = vector.load %arg7[%90, %c0_36] : memref<64x128xf32, #tpu.memory_space<vmem>>, vector<8x128xf32>
    %c0_37 = arith.constant 0 : index
    %c0_38 = arith.constant 0 : index
    %92 = vector.load %arg2[%c0_37, %c0_38] : memref<128x128xf32, #tpu.memory_space<vmem>>, vector<128x128xf32>
    %cst_39 = arith.constant dense<0.000000e+00> : vector<8x128xf32>
    %93 = tpu.matmul %87, %92, %cst_39 {dimension_numbers = #tpu.dot_dimension_numbers<[1], [0], [0], [1], [0, 0, 1, 1], [], []>} : vector<8x128xf32>, vector<128x128xf32>, vector<8x128xf32> -> vector<8x128xf32>
    %94 = arith.addf %91, %93 : vector<8x128xf32>
    %95 = math.tanh %94 : vector<8x128xf32>
    %96 = arith.negf %94 : vector<8x128xf32>
    %97 = math.exp %96 : vector<8x128xf32>
    %cst_40 = arith.constant 1.000000e+00 : f32
    %98 = vector.broadcast %cst_40 : f32 to vector<8x128xf32>
    %99 = arith.addf %98, %97 : vector<8x128xf32>
    %100 = arith.divf %98, %99 : vector<8x128xf32>
    %101 = arith.select %12, %95, %100 : vector<8x128xi1>, vector<8x128xf32>
    %c96_i32_41 = arith.constant 96 : i32
    %102 = tpu.dynamic_rotate %101 by %c96_i32_41 dim 1 : vector<8x128xf32>, i32 -> vector<8x128xf32>
    %c64_i32_42 = arith.constant 64 : i32
    %103 = tpu.dynamic_rotate %101 by %c64_i32_42 dim 1 : vector<8x128xf32>, i32 -> vector<8x128xf32>
    %c32_i32_43 = arith.constant 32 : i32
    %104 = tpu.dynamic_rotate %101 by %c32_i32_43 dim 1 : vector<8x128xf32>, i32 -> vector<8x128xf32>
    %105 = arith.mulf %102, %85 : vector<8x128xf32>
    %106 = arith.mulf %101, %103 : vector<8x128xf32>
    %107 = arith.addf %105, %106 : vector<8x128xf32>
    %108 = arith.mulf %107, %16 : vector<8x128xf32>
    %109 = math.tanh %108 : vector<8x128xf32>
    %110 = arith.mulf %104, %109 : vector<8x128xf32>
    %c4_i32 = arith.constant 4 : i32
    %c8_i32_44 = arith.constant 8 : i32
    %111 = arith.muli %c4_i32, %c8_i32_44 : i32
    %112 = tpu.assume_multiple %111, 8 : i32
    %113 = arith.index_cast %112 : i32 to index
    %c0_45 = arith.constant 0 : index
    %114 = vector.load %arg7[%113, %c0_45] : memref<64x128xf32, #tpu.memory_space<vmem>>, vector<8x128xf32>
    %c0_46 = arith.constant 0 : index
    %c0_47 = arith.constant 0 : index
    %115 = vector.load %arg2[%c0_46, %c0_47] : memref<128x128xf32, #tpu.memory_space<vmem>>, vector<128x128xf32>
    %cst_48 = arith.constant dense<0.000000e+00> : vector<8x128xf32>
    %116 = tpu.matmul %110, %115, %cst_48 {dimension_numbers = #tpu.dot_dimension_numbers<[1], [0], [0], [1], [0, 0, 1, 1], [], []>} : vector<8x128xf32>, vector<128x128xf32>, vector<8x128xf32> -> vector<8x128xf32>
    %117 = arith.addf %114, %116 : vector<8x128xf32>
    %118 = math.tanh %117 : vector<8x128xf32>
    %119 = arith.negf %117 : vector<8x128xf32>
    %120 = math.exp %119 : vector<8x128xf32>
    %cst_49 = arith.constant 1.000000e+00 : f32
    %121 = vector.broadcast %cst_49 : f32 to vector<8x128xf32>
    %122 = arith.addf %121, %120 : vector<8x128xf32>
    %123 = arith.divf %121, %122 : vector<8x128xf32>
    %124 = arith.select %12, %118, %123 : vector<8x128xi1>, vector<8x128xf32>
    %c96_i32_50 = arith.constant 96 : i32
    %125 = tpu.dynamic_rotate %124 by %c96_i32_50 dim 1 : vector<8x128xf32>, i32 -> vector<8x128xf32>
    %c64_i32_51 = arith.constant 64 : i32
    %126 = tpu.dynamic_rotate %124 by %c64_i32_51 dim 1 : vector<8x128xf32>, i32 -> vector<8x128xf32>
    %c32_i32_52 = arith.constant 32 : i32
    %127 = tpu.dynamic_rotate %124 by %c32_i32_52 dim 1 : vector<8x128xf32>, i32 -> vector<8x128xf32>
    %128 = arith.mulf %125, %108 : vector<8x128xf32>
    %129 = arith.mulf %124, %126 : vector<8x128xf32>
    %130 = arith.addf %128, %129 : vector<8x128xf32>
    %131 = arith.mulf %130, %16 : vector<8x128xf32>
    %132 = math.tanh %131 : vector<8x128xf32>
    %133 = arith.mulf %127, %132 : vector<8x128xf32>
    %c5_i32 = arith.constant 5 : i32
    %c8_i32_53 = arith.constant 8 : i32
    %134 = arith.muli %c5_i32, %c8_i32_53 : i32
    %135 = tpu.assume_multiple %134, 8 : i32
    %136 = arith.index_cast %135 : i32 to index
    %c0_54 = arith.constant 0 : index
    %137 = vector.load %arg7[%136, %c0_54] : memref<64x128xf32, #tpu.memory_space<vmem>>, vector<8x128xf32>
    %c0_55 = arith.constant 0 : index
    %c0_56 = arith.constant 0 : index
    %138 = vector.load %arg2[%c0_55, %c0_56] : memref<128x128xf32, #tpu.memory_space<vmem>>, vector<128x128xf32>
    %cst_57 = arith.constant dense<0.000000e+00> : vector<8x128xf32>
    %139 = tpu.matmul %133, %138, %cst_57 {dimension_numbers = #tpu.dot_dimension_numbers<[1], [0], [0], [1], [0, 0, 1, 1], [], []>} : vector<8x128xf32>, vector<128x128xf32>, vector<8x128xf32> -> vector<8x128xf32>
    %140 = arith.addf %137, %139 : vector<8x128xf32>
    %141 = math.tanh %140 : vector<8x128xf32>
    %142 = arith.negf %140 : vector<8x128xf32>
    %143 = math.exp %142 : vector<8x128xf32>
    %cst_58 = arith.constant 1.000000e+00 : f32
    %144 = vector.broadcast %cst_58 : f32 to vector<8x128xf32>
    %145 = arith.addf %144, %143 : vector<8x128xf32>
    %146 = arith.divf %144, %145 : vector<8x128xf32>
    %147 = arith.select %12, %141, %146 : vector<8x128xi1>, vector<8x128xf32>
    %c96_i32_59 = arith.constant 96 : i32
    %148 = tpu.dynamic_rotate %147 by %c96_i32_59 dim 1 : vector<8x128xf32>, i32 -> vector<8x128xf32>
    %c64_i32_60 = arith.constant 64 : i32
    %149 = tpu.dynamic_rotate %147 by %c64_i32_60 dim 1 : vector<8x128xf32>, i32 -> vector<8x128xf32>
    %c32_i32_61 = arith.constant 32 : i32
    %150 = tpu.dynamic_rotate %147 by %c32_i32_61 dim 1 : vector<8x128xf32>, i32 -> vector<8x128xf32>
    %151 = arith.mulf %148, %131 : vector<8x128xf32>
    %152 = arith.mulf %147, %149 : vector<8x128xf32>
    %153 = arith.addf %151, %152 : vector<8x128xf32>
    %154 = arith.mulf %153, %16 : vector<8x128xf32>
    %155 = math.tanh %154 : vector<8x128xf32>
    %156 = arith.mulf %150, %155 : vector<8x128xf32>
    %c6_i32 = arith.constant 6 : i32
    %c8_i32_62 = arith.constant 8 : i32
    %157 = arith.muli %c6_i32, %c8_i32_62 : i32
    %158 = tpu.assume_multiple %157, 8 : i32
    %159 = arith.index_cast %158 : i32 to index
    %c0_63 = arith.constant 0 : index
    %160 = vector.load %arg7[%159, %c0_63] : memref<64x128xf32, #tpu.memory_space<vmem>>, vector<8x128xf32>
    %c0_64 = arith.constant 0 : index
    %c0_65 = arith.constant 0 : index
    %161 = vector.load %arg2[%c0_64, %c0_65] : memref<128x128xf32, #tpu.memory_space<vmem>>, vector<128x128xf32>
    %cst_66 = arith.constant dense<0.000000e+00> : vector<8x128xf32>
    %162 = tpu.matmul %156, %161, %cst_66 {dimension_numbers = #tpu.dot_dimension_numbers<[1], [0], [0], [1], [0, 0, 1, 1], [], []>} : vector<8x128xf32>, vector<128x128xf32>, vector<8x128xf32> -> vector<8x128xf32>
    %163 = arith.addf %160, %162 : vector<8x128xf32>
    %164 = math.tanh %163 : vector<8x128xf32>
    %165 = arith.negf %163 : vector<8x128xf32>
    %166 = math.exp %165 : vector<8x128xf32>
    %cst_67 = arith.constant 1.000000e+00 : f32
    %167 = vector.broadcast %cst_67 : f32 to vector<8x128xf32>
    %168 = arith.addf %167, %166 : vector<8x128xf32>
    %169 = arith.divf %167, %168 : vector<8x128xf32>
    %170 = arith.select %12, %164, %169 : vector<8x128xi1>, vector<8x128xf32>
    %c96_i32_68 = arith.constant 96 : i32
    %171 = tpu.dynamic_rotate %170 by %c96_i32_68 dim 1 : vector<8x128xf32>, i32 -> vector<8x128xf32>
    %c64_i32_69 = arith.constant 64 : i32
    %172 = tpu.dynamic_rotate %170 by %c64_i32_69 dim 1 : vector<8x128xf32>, i32 -> vector<8x128xf32>
    %c32_i32_70 = arith.constant 32 : i32
    %173 = tpu.dynamic_rotate %170 by %c32_i32_70 dim 1 : vector<8x128xf32>, i32 -> vector<8x128xf32>
    %174 = arith.mulf %171, %154 : vector<8x128xf32>
    %175 = arith.mulf %170, %172 : vector<8x128xf32>
    %176 = arith.addf %174, %175 : vector<8x128xf32>
    %177 = arith.mulf %176, %16 : vector<8x128xf32>
    %178 = math.tanh %177 : vector<8x128xf32>
    %179 = arith.mulf %173, %178 : vector<8x128xf32>
    %c7_i32 = arith.constant 7 : i32
    %c8_i32_71 = arith.constant 8 : i32
    %180 = arith.muli %c7_i32, %c8_i32_71 : i32
    %181 = tpu.assume_multiple %180, 8 : i32
    %182 = arith.index_cast %181 : i32 to index
    %c0_72 = arith.constant 0 : index
    %183 = vector.load %arg7[%182, %c0_72] : memref<64x128xf32, #tpu.memory_space<vmem>>, vector<8x128xf32>
    %c0_73 = arith.constant 0 : index
    %c0_74 = arith.constant 0 : index
    %184 = vector.load %arg2[%c0_73, %c0_74] : memref<128x128xf32, #tpu.memory_space<vmem>>, vector<128x128xf32>
    %cst_75 = arith.constant dense<0.000000e+00> : vector<8x128xf32>
    %185 = tpu.matmul %179, %184, %cst_75 {dimension_numbers = #tpu.dot_dimension_numbers<[1], [0], [0], [1], [0, 0, 1, 1], [], []>} : vector<8x128xf32>, vector<128x128xf32>, vector<8x128xf32> -> vector<8x128xf32>
    %186 = arith.addf %183, %185 : vector<8x128xf32>
    %187 = math.tanh %186 : vector<8x128xf32>
    %188 = arith.negf %186 : vector<8x128xf32>
    %189 = math.exp %188 : vector<8x128xf32>
    %cst_76 = arith.constant 1.000000e+00 : f32
    %190 = vector.broadcast %cst_76 : f32 to vector<8x128xf32>
    %191 = arith.addf %190, %189 : vector<8x128xf32>
    %192 = arith.divf %190, %191 : vector<8x128xf32>
    %193 = arith.select %12, %187, %192 : vector<8x128xi1>, vector<8x128xf32>
    %c96_i32_77 = arith.constant 96 : i32
    %194 = tpu.dynamic_rotate %193 by %c96_i32_77 dim 1 : vector<8x128xf32>, i32 -> vector<8x128xf32>
    %c64_i32_78 = arith.constant 64 : i32
    %195 = tpu.dynamic_rotate %193 by %c64_i32_78 dim 1 : vector<8x128xf32>, i32 -> vector<8x128xf32>
    %c32_i32_79 = arith.constant 32 : i32
    %196 = tpu.dynamic_rotate %193 by %c32_i32_79 dim 1 : vector<8x128xf32>, i32 -> vector<8x128xf32>
    %197 = arith.mulf %194, %177 : vector<8x128xf32>
    %198 = arith.mulf %193, %195 : vector<8x128xf32>
    %199 = arith.addf %197, %198 : vector<8x128xf32>
    %200 = arith.mulf %199, %16 : vector<8x128xf32>
    %201 = math.tanh %200 : vector<8x128xf32>
    %202 = arith.mulf %196, %201 : vector<8x128xf32>
    %c8_i32_80 = arith.constant 8 : i32
    %c0_81 = arith.constant 0 : index
    %c0_82 = arith.constant 0 : index
    %203 = vector.load %arg4[%c0_81, %c0_82] : memref<128x128xf32, #tpu.memory_space<vmem>>, vector<128x128xf32>
    %cst_83 = arith.constant dense<0.000000e+00> : vector<8x128xf32>
    %204 = tpu.matmul %202, %203, %cst_83 {dimension_numbers = #tpu.dot_dimension_numbers<[1], [0], [0], [1], [0, 0, 1, 1], [], []>} : vector<8x128xf32>, vector<128x128xf32>, vector<8x128xf32> -> vector<8x128xf32>
    %c0_84 = arith.constant 0 : index
    %c0_85 = arith.constant 0 : index
    %205 = vector.load %arg5[%c0_84, %c0_85] : memref<1x128xf32, #tpu.memory_space<vmem>>, vector<1x128xf32>
    %206 = vector.broadcast %205 : vector<1x128xf32> to vector<8x128xf32>
    %207 = arith.addf %204, %206 : vector<8x128xf32>
    %c0_86 = arith.constant 0 : index
    %c0_87 = arith.constant 0 : index
    %208 = vector.load %arg6[%c0_86, %c0_87] : memref<8x128xf32, #tpu.memory_space<vmem>>, vector<8x128xf32>
    tpu.vector_store %arg6[%c0_86, %c0_87], %207 {strides = array<i32>} : memref<8x128xf32, #tpu.memory_space<vmem>>, vector<8x128xf32>,
    return
  }
}

</mosaic_0001>

<llo_original>
// kernel: forward.1
$region0: #{forward.1}
  #allocation0 [shape = 'u32[]', space=smem, size = 0x4, offset = 0x4, fixed_abs, tag = 'smem constant byte address 0x4 - core index']
  #allocation1 [shape = 'u32[144,128]{1,0:T(1,128)}', space=vmem, size = 0x12000, scoped, tag = 'internal scratch']
  #allocation2 [shape = 'f32[64,128]{1,0:T(8,128)}', space=vmem, size = 0x8000, scoped, tag = 'scratch operand']
  %s0 = inlined_call_operand.vmem [shape: f32[64,16], index: 0, kind: input, shape index: {}]
  %s1 = inlined_call_operand.hbm [shape: f32[16,128], index: 1, kind: input, shape index: {}]
  %s2 = inlined_call_operand.hbm [shape: f32[128,128], index: 2, kind: input, shape index: {}]
  %s3 = inlined_call_operand.vmem [shape: f32[1,128], index: 3, kind: input, shape index: {}]
  %s4 = inlined_call_operand.vmem [shape: f32[128,128], index: 4, kind: input, shape index: {}]
  %s5 = inlined_call_operand.vmem [shape: f32[1,128], index: 5, kind: input, shape index: {}]
  %s6 = inlined_call_operand.vmem [shape: f32[8,128], index: 6, kind: output, shape index: {}]
  %s7 = sld [smem:[#allocation0]]
  $region42: #{forward.1} parent=0
    _
  %s9 = ssub.s32 1, %s7
  %s10 = scalar_select 0, %s9, %s7
  $region1: #{forward.1} parent=0
    #allocation3 [shape = 'u8[8192]{0}', space=vmem, size = 0x2000, scoped, tag = 'input window, operand 1, single buffered']
    #allocation4 [shape = 's32[1]{0}', space=sflag, size = 0x4, scoped, tag = 'scoped memory for forward.1']
    #allocation5 [shape = 'u8[65536]{0}', space=vmem, size = 0x10000, scoped, tag = 'input window, operand 2, single buffered']
    #allocation6 [shape = 's32[1]{0}', space=sflag, size = 0x4, scoped, tag = 'scoped memory for forward.1']
    %11 = vsyncpa [#allocation4], 0
    %12 = vsyncpa [#allocation6], 0
    // Predicated region
    $region2: #{forward.1} parent=1 // pred_check
      _
    $region3: #{forward.1} parent=1 // pred_check_branch
      %14 = sbr.rel (0) target = $region5
    $region4: #{forward.1} parent=1 // pred_region
      _
    $region5: #{forward.1} parent=1 // pred_fallthru
      _
    // Predicated region
    $region6: #{forward.1} parent=1 // pred_check
      _
    $region7: #{forward.1} parent=1 // pred_check_branch
      %16 = sbr.rel (0) target = $region9
    $region8: #{forward.1} parent=1 // pred_region
      %s18 = ssub.s32 256, 256
      %19 = vsyncadd [#allocation4], %s18
      %s20 = sshll.u32 [#allocation3], 4
      %s21 = int_to_ptr.vmem [resolvable:$true] %s20
      %26 = dma.hbm_to_vmem [thread:$0]  %s1, 256, %s21, [#allocation4], 128, 128, 8
    $region9: #{forward.1} parent=1 // pred_fallthru
      _
    // Predicated region
    $region10: #{forward.1} parent=1 // pred_check
      _
    $region11: #{forward.1} parent=1 // pred_check_branch
      %28 = sbr.rel (0) target = $region13
    $region12: #{forward.1} parent=1 // pred_region
      %s30 = ssub.s32 2048, 2048
      %31 = vsyncadd [#allocation6], %s30
      %s32 = sshll.u32 [#allocation5], 4
      %s33 = int_to_ptr.vmem [resolvable:$true] %s32
      %38 = dma.hbm_to_vmem [thread:$0]  %s2, 2048, %s33, [#allocation6], 128, 128, 8
    $region13: #{forward.1} parent=1 // pred_fallthru
      _
    // Predicated region
    $region14: #{forward.1} parent=1 // pred_check
      _
    $region15: #{forward.1} parent=1 // pred_check_branch
      %40 = sbr.rel (0) target = $region17
    $region16: #{forward.1} parent=1 // pred_region
      _
    $region17: #{forward.1} parent=1 // pred_fallthru
      _
    // Predicated region
    $region18: #{forward.1} parent=1 // pred_check
      _
    $region19: #{forward.1} parent=1 // pred_check_branch
      %42 = sbr.rel (0) target = $region21
    $region20: #{forward.1} parent=1 // pred_region
      _
    $region21: #{forward.1} parent=1 // pred_fallthru
      _
    // Predicated region
    $region22: #{forward.1} parent=1 // pred_check
      _
    $region23: #{forward.1} parent=1 // pred_check_branch
      %44 = sbr.rel (0) target = $region25
    $region24: #{forward.1} parent=1 // pred_region
      _
    $region25: #{forward.1} parent=1 // pred_fallthru
      _
    // Predicated region
    $region26: #{forward.1} parent=1 // pred_check
      _
    $region27: #{forward.1} parent=1 // pred_check_branch
      %46 = sbr.rel (0) target = $region29
    $region28: #{forward.1} parent=1 // pred_region
      %47 = dma.done [#allocation4], 256
    $region29: #{forward.1} parent=1 // pred_fallthru
      _
    // Predicated region
    $region30: #{forward.1} parent=1 // pred_check
      _
    $region31: #{forward.1} parent=1 // pred_check_branch
      %49 = sbr.rel (0) target = $region33
    $region32: #{forward.1} parent=1 // pred_region
      %50 = dma.done [#allocation6], 2048
    $region33: #{forward.1} parent=1 // pred_fallthru
      _
    %v51 = vld [vmem:[%s0] sm:$0xff]
    %v52 = vld [vmem:[%s0 + $0x8] sm:$0xff]
    %v53 = vld [vmem:[%s0 + $0x10] sm:$0xff]
    %v54 = vld [vmem:[%s0 + $0x18] sm:$0xff]
    %v55 = vld [vmem:[%s0 + $0x20] sm:$0xff]
    %v56 = vld [vmem:[%s0 + $0x28] sm:$0xff]
    %v57 = vld [vmem:[%s0 + $0x30] sm:$0xff]
    %v58 = vld [vmem:[%s0 + $0x38] sm:$0xff]
    %v59 = vld [vmem:[#allocation3] sm:$0xff]
    %v60 = vld [vmem:[#allocation3 + $0x8] sm:$0xff]
    %v61 = vld [vmem:[%s3] sm:$0x1]
    %v63 = vlaneseq
    %v64 = vshrl.u32 %v63, 7
    %v65 = vsub.s32 0, %v64
    %v66 = vrot.slane %v61, %v65
    %vm68 = vcmask 130048
    %v70 = vsel %vm68, %v51, 0
    %v73 = vsel %vm68, %v52, 0
    %v76 = vsel %vm68, %v53, 0
    %v79 = vsel %vm68, %v54, 0
    %v82 = vsel %vm68, %v55, 0
    %v85 = vsel %vm68, %v56, 0
    %v88 = vsel %vm68, %v57, 0
    %v91 = vsel %vm68, %v58, 0
    %93 = vmatprep.subr.mxu0 0.0
    %94 = vmatpush1.msra.mxu0 %v59
    %95 = vmatprep.subr.mxu0 0.0
    %96 = vmatpush1.msra.mxu0 %v60
    %97 = vmatprep.subr.mxu0 0.0
    %98 = vmatpush1.msra.mxu0 0.0
    %99 = vmatprep.subr.mxu0 0.0
    %100 = vmatpush1.msra.mxu0 0.0
    %101 = vmatprep.subr.mxu0 0.0
    %102 = vmatpush1.msra.mxu0 0.0
    %103 = vmatprep.subr.mxu0 0.0
    %104 = vmatpush1.msra.mxu0 0.0
    %105 = vmatprep.subr.mxu0 0.0
    %106 = vmatpush1.msra.mxu0 0.0
    %107 = vmatprep.subr.mxu0 0.0
    %108 = vmatpush1.msra.mxu0 0.0
    %109 = vmatprep.subr.mxu0 0.0
    %110 = vmatpush1.msra.mxu0 0.0
    %111 = vmatprep.subr.mxu0 0.0
    %112 = vmatpush1.msra.mxu0 0.0
    %113 = vmatprep.subr.mxu0 0.0
    %114 = vmatpush1.msra.mxu0 0.0
    %115 = vmatprep.subr.mxu0 0.0
    %116 = vmatpush1.msra.mxu0 0.0
    %117 = vmatprep.subr.mxu0 0.0
    %118 = vmatpush1.msra.mxu0 0.0
    %119 = vmatprep.subr.mxu0 0.0
    %120 = vmatpush1.msra.mxu0 0.0
    %121 = vmatprep.subr.mxu0 0.0
    %122 = vmatpush1.msra.mxu0 0.0
    %123 = vmatprep.subr.mxu0 0.0
    %124 = vmatpush1.msra.mxu0 0.0
    %125 = vmatprep.subr.mxu0 0.0
    %126 = vmatpush1.msra.mxu0 0.0
    %127 = vmatprep.subr.mxu0 0.0
    %128 = vmatpush1.msra.mxu0 0.0
    %129 = vmatprep.subr.mxu0 0.0
    %130 = vmatpush1.msra.mxu0 0.0
    %131 = vmatprep.subr.mxu0 0.0
    %132 = vmatpush1.msra.mxu0 0.0
    %133 = vmatprep.subr.mxu0 0.0
    %134 = vmatpush1.msra.mxu0 0.0
    %135 = vmatprep.subr.mxu0 0.0
    %136 = vmatpush1.msra.mxu0 0.0
    %137 = vmatprep.subr.mxu0 0.0
    %138 = vmatpush1.msra.mxu0 0.0
    %139 = vmatprep.subr.mxu0 0.0
    %140 = vmatpush1.msra.mxu0 0.0
    %141 = vmatprep.subr.mxu0 0.0
    %142 = vmatpush1.msra.mxu0 0.0
    %143 = vmatprep.subr.mxu0 0.0
    %144 = vmatpush1.msra.mxu0 0.0
    %145 = vmatprep.subr.mxu0 0.0
    %146 = vmatpush1.msra.mxu0 0.0
    %147 = vmatprep.subr.mxu0 0.0
    %148 = vmatpush1.msra.mxu0 0.0
    %149 = vmatprep.subr.mxu0 0.0
    %150 = vmatpush1.msra.mxu0 0.0
    %151 = vmatprep.subr.mxu0 0.0
    %152 = vmatpush1.msra.mxu0 0.0
    %153 = vmatprep.subr.mxu0 0.0
    %154 = vmatpush1.msra.mxu0 0.0
    %155 = vmatprep.subr.mxu0 0.0
    %156 = vmatpush1.msra.mxu0 0.0
    %157 = vmatprep.mubr.f32.mxu0 0.0
    %158 = vmatmul.mubr.f32.gmra.mrb[0].mxu0 %v70
    %v159 = vpop.f32.mrb[0].mxu0
    %v160 = vadd.f32 %v66, %v159
    %v161 = vpop.f32.mrb[0].mxu0
    %162 = vmatprep.mubr.f32.mxu0 0.0
    %163 = vmatmul.mubr.f32.gmra.mrb[0].mxu0 %v73
    %v164 = vpop.f32.mrb[0].mxu0
    %v165 = vadd.f32 %v66, %v164
    %v166 = vpop.f32.mrb[0].mxu0
    %167 = vmatprep.mubr.f32.mxu0 0.0
    %168 = vmatmul.mubr.f32.gmra.mrb[0].mxu0 %v76
    %v169 = vpop.f32.mrb[0].mxu0
    %v170 = vadd.f32 %v66, %v169
    %v171 = vpop.f32.mrb[0].mxu0
    %172 = vmatprep.mubr.f32.mxu0 0.0
    %173 = vmatmul.mubr.f32.gmra.mrb[0].mxu0 %v79
    %v174 = vpop.f32.mrb[0].mxu0
    %v175 = vadd.f32 %v66, %v174
    %v176 = vpop.f32.mrb[0].mxu0
    %177 = vmatprep.mubr.f32.mxu0 0.0
    %178 = vmatmul.mubr.f32.gmra.mrb[0].mxu0 %v82
    %v179 = vpop.f32.mrb[0].mxu0
    %v180 = vadd.f32 %v66, %v179
    %v181 = vpop.f32.mrb[0].mxu0
    %182 = vmatprep.mubr.f32.mxu0 0.0
    %183 = vmatmul.mubr.f32.gmra.mrb[0].mxu0 %v85
    %v184 = vpop.f32.mrb[0].mxu0
    %v185 = vadd.f32 %v66, %v184
    %v186 = vpop.f32.mrb[0].mxu0
    %187 = vmatprep.mubr.f32.mxu0 0.0
    %188 = vmatmul.mubr.f32.gmra.mrb[0].mxu0 %v88
    %v189 = vpop.f32.mrb[0].mxu0
    %v190 = vadd.f32 %v66, %v189
    %v191 = vpop.f32.mrb[0].mxu0
    %192 = vmatprep.mubr.f32.mxu0 0.0
    %193 = vmatmul.mubr.f32.gmra.mrb[0].mxu0 %v91
    %v194 = vpop.f32.mrb[0].mxu0
    %v195 = vadd.f32 %v66, %v194
    %v196 = vpop.f32.mrb[0].mxu0
    %197 = vdwg.mxu0
    %198 = vst [vmem:[#allocation2] sm:$0xff] %v160
    %199 = vst [vmem:[#allocation2 + $0x8] sm:$0xff] %v165
    %200 = vst [vmem:[#allocation2 + $0x10] sm:$0xff] %v170
    %201 = vst [vmem:[#allocation2 + $0x18] sm:$0xff] %v175
    %202 = vst [vmem:[#allocation2 + $0x20] sm:$0xff] %v180
    %203 = vst [vmem:[#allocation2 + $0x28] sm:$0xff] %v185
    %204 = vst [vmem:[#allocation2 + $0x30] sm:$0xff] %v190
    %205 = vst [vmem:[#allocation2 + $0x38] sm:$0xff] %v195
    %v206 = vlaneseq
    %v207 = vand.u32 %v206, 127
    %vm208 = vcmp.ge.s32.totalorder %v207, 64
    %vm209 = vcmp.lt.s32.totalorder %v207, 96
    %vm210 = vmand %vm208, %vm209
    %vm211 = vcmp.lt.s32.totalorder %v207, 32
    %v212 = vsel %vm211, 1, 0
    %v213 = vcvt.s32.f32 %v212
    %v214 = vld [vmem:[#allocation2] sm:$0xff]
    %v215 = vld [vmem:[#allocation5] sm:$0xff]
    %v216 = vld [vmem:[#allocation5 + $0x8] sm:$0xff]
    %v217 = vld [vmem:[#allocation5 + $0x10] sm:$0xff]
    %v218 = vld [vmem:[#allocation5 + $0x18] sm:$0xff]
    %v219 = vld [vmem:[#allocation5 + $0x20] sm:$0xff]
    %v220 = vld [vmem:[#allocation5 + $0x28] sm:$0xff]
    %v221 = vld [vmem:[#allocation5 + $0x30] sm:$0xff]
    %v222 = vld [vmem:[#allocation5 + $0x38] sm:$0xff]
    %v223 = vld [vmem:[#allocation5 + $0x40] sm:$0xff]
    %v224 = vld [vmem:[#allocation5 + $0x48] sm:$0xff]
    %v225 = vld [vmem:[#allocation5 + $0x50] sm:$0xff]
    %v226 = vld [vmem:[#allocation5 + $0x58] sm:$0xff]
    %v227 = vld [vmem:[#allocation5 + $0x60] sm:$0xff]
    %v228 = vld [vmem:[#allocation5 + $0x68] sm:$0xff]
    %v229 = vld [vmem:[#allocation5 + $0x70] sm:$0xff]
    %v230 = vld [vmem:[#allocation5 + $0x78] sm:$0xff]
    %231 = vmatprep.subr.mxu0 0.0
    %232 = vmatpush1.msra.mxu0 %v215
    %233 = vmatprep.subr.mxu0 0.0
    %234 = vmatpush1.msra.mxu0 %v216
    %235 = vmatprep.subr.mxu0 0.0
    %236 = vmatpush1.msra.mxu0 %v217
    %237 = vmatprep.subr.mxu0 0.0
    %238 = vmatpush1.msra.mxu0 %v218
    %239 = vmatprep.subr.mxu0 0.0
    %240 = vmatpush1.msra.mxu0 %v219
    %241 = vmatprep.subr.mxu0 0.0
    %242 = vmatpush1.msra.mxu0 %v220
    %243 = vmatprep.subr.mxu0 0.0
    %244 = vmatpush1.msra.mxu0 %v221
    %245 = vmatprep.subr.mxu0 0.0
    %246 = vmatpush1.msra.mxu0 %v222
    %247 = vmatprep.subr.mxu0 0.0
    %248 = vmatpush1.msra.mxu0 %v223
    %249 = vmatprep.subr.mxu0 0.0
    %250 = vmatpush1.msra.mxu0 %v224
    %251 = vmatprep.subr.mxu0 0.0
    %252 = vmatpush1.msra.mxu0 %v225
    %253 = vmatprep.subr.mxu0 0.0
    %254 = vmatpush1.msra.mxu0 %v226
    %255 = vmatprep.subr.mxu0 0.0
    %256 = vmatpush1.msra.mxu0 %v227
    %257 = vmatprep.subr.mxu0 0.0
    %258 = vmatpush1.msra.mxu0 %v228
    %259 = vmatprep.subr.mxu0 0.0
    %260 = vmatpush1.msra.mxu0 %v229
    %261 = vmatprep.subr.mxu0 0.0
    %262 = vmatpush1.msra.mxu0 %v230
    %263 = vmatprep.subr.mxu0 0.0
    %264 = vmatpush1.msra.mxu0 0.0
    %265 = vmatprep.subr.mxu0 0.0
    %266 = vmatpush1.msra.mxu0 0.0
    %267 = vmatprep.subr.mxu0 0.0
    %268 = vmatpush1.msra.mxu0 0.0
    %269 = vmatprep.subr.mxu0 0.0
    %270 = vmatpush1.msra.mxu0 0.0
    %271 = vmatprep.subr.mxu0 0.0
    %272 = vmatpush1.msra.mxu0 0.0
    %273 = vmatprep.subr.mxu0 0.0
    %274 = vmatpush1.msra.mxu0 0.0
    %275 = vmatprep.subr.mxu0 0.0
    %276 = vmatpush1.msra.mxu0 0.0
    %277 = vmatprep.subr.mxu0 0.0
    %278 = vmatpush1.msra.mxu0 0.0
    %279 = vmatprep.subr.mxu0 0.0
    %280 = vmatpush1.msra.mxu0 0.0
    %281 = vmatprep.subr.mxu0 0.0
    %282 = vmatpush1.msra.mxu0 0.0
    %283 = vmatprep.subr.mxu0 0.0
    %284 = vmatpush1.msra.mxu0 0.0
    %285 = vmatprep.subr.mxu0 0.0
    %286 = vmatpush1.msra.mxu0 0.0
    %287 = vmatprep.subr.mxu0 0.0
    %288 = vmatpush1.msra.mxu0 0.0
    %289 = vmatprep.subr.mxu0 0.0
    %290 = vmatpush1.msra.mxu0 0.0
    %291 = vmatprep.subr.mxu0 0.0
    %292 = vmatpush1.msra.mxu0 0.0
    %293 = vmatprep.subr.mxu0 0.0
    %294 = vmatpush1.msra.mxu0 0.0
    %295 = vmatprep.mubr.f32.mxu0 0.0
    %296 = vmatmul.mubr.f32.gmra.mrb[0].mxu0 0.0
    %v297 = vpop.f32.mrb[0].mxu0
    %v298 = vadd.f32 0.0, %v297
    %v299 = vpop.f32.mrb[0].mxu0
    %300 = vdwg.mxu0
    %v301 = vadd.f32 %v214, %v298
    %v302 = vtanh.pop %v301
    %v303 = vxor.u32 %v301, 2147483648
    %v304 = vmul.f32 %v303, 1.442695
    %v305 = vpow.pop %v304
    %v306 = vadd.f32 %v305, 1.0
    %v307 = vrcp.pop %v306
    %v308 = vmul.f32 1.0, %v307
    %v309 = vsel %vm210, %v302, %v308
    %310 = vrot.lane.b32.xlu0 %v309, 96
    %v311 = vpop.permute.xlu0 %310
    %312 = vrot.lane.b32.xlu0 %v309, 64
    %v313 = vpop.permute.xlu0 %312
    %314 = vrot.lane.b32.xlu0 %v309, 32
    %v315 = vpop.permute.xlu0 %314
    %v316 = vmul.f32 %v311, 0.0
    %v317 = vmul.f32 %v309, %v313
    %v318 = vadd.f32 %v316, %v317
    %v319 = vmul.f32 %v318, %v213
    %v320 = vtanh.pop %v319
    %v321 = vmul.f32 %v315, %v320
    %s322 = scalar_lea.vmem [#allocation2], 8
    %v323 = vld [vmem:[%s322] sm:$0xff]
    %324 = vmatprep.subr.mxu0 0.0
    %325 = vmatpush1.msra.mxu0 %v215
    %326 = vmatprep.subr.mxu0 0.0
    %327 = vmatpush1.msra.mxu0 %v216
    %328 = vmatprep.subr.mxu0 0.0
    %329 = vmatpush1.msra.mxu0 %v217
    %330 = vmatprep.subr.mxu0 0.0
    %331 = vmatpush1.msra.mxu0 %v218
    %332 = vmatprep.subr.mxu0 0.0
    %333 = vmatpush1.msra.mxu0 %v219
    %334 = vmatprep.subr.mxu0 0.0
    %335 = vmatpush1.msra.mxu0 %v220
    %336 = vmatprep.subr.mxu0 0.0
    %337 = vmatpush1.msra.mxu0 %v221
    %338 = vmatprep.subr.mxu0 0.0
    %339 = vmatpush1.msra.mxu0 %v222
    %340 = vmatprep.subr.mxu0 0.0
    %341 = vmatpush1.msra.mxu0 %v223
    %342 = vmatprep.subr.mxu0 0.0
    %343 = vmatpush1.msra.mxu0 %v224
    %344 = vmatprep.subr.mxu0 0.0
    %345 = vmatpush1.msra.mxu0 %v225
    %346 = vmatprep.subr.mxu0 0.0
    %347 = vmatpush1.msra.mxu0 %v226
    %348 = vmatprep.subr.mxu0 0.0
    %349 = vmatpush1.msra.mxu0 %v227
    %350 = vmatprep.subr.mxu0 0.0
    %351 = vmatpush1.msra.mxu0 %v228
    %352 = vmatprep.subr.mxu0 0.0
    %353 = vmatpush1.msra.mxu0 %v229
    %354 = vmatprep.subr.mxu0 0.0
    %355 = vmatpush1.msra.mxu0 %v230
    %356 = vmatprep.subr.mxu0 0.0
    %357 = vmatpush1.msra.mxu0 0.0
    %358 = vmatprep.subr.mxu0 0.0
    %359 = vmatpush1.msra.mxu0 0.0
    %360 = vmatprep.subr.mxu0 0.0
    %361 = vmatpush1.msra.mxu0 0.0
    %362 = vmatprep.subr.mxu0 0.0
    %363 = vmatpush1.msra.mxu0 0.0
    %364 = vmatprep.subr.mxu0 0.0
    %365 = vmatpush1.msra.mxu0 0.0
    %366 = vmatprep.subr.mxu0 0.0
    %367 = vmatpush1.msra.mxu0 0.0
    %368 = vmatprep.subr.mxu0 0.0
    %369 = vmatpush1.msra.mxu0 0.0
    %370 = vmatprep.subr.mxu0 0.0
    %371 = vmatpush1.msra.mxu0 0.0
    %372 = vmatprep.subr.mxu0 0.0
    %373 = vmatpush1.msra.mxu0 0.0
    %374 = vmatprep.subr.mxu0 0.0
    %375 = vmatpush1.msra.mxu0 0.0
    %376 = vmatprep.subr.mxu0 0.0
    %377 = vmatpush1.msra.mxu0 0.0
    %378 = vmatprep.subr.mxu0 0.0
    %379 = vmatpush1.msra.mxu0 0.0
    %380 = vmatprep.subr.mxu0 0.0
    %381 = vmatpush1.msra.mxu0 0.0
    %382 = vmatprep.subr.mxu0 0.0
    %383 = vmatpush1.msra.mxu0 0.0
    %384 = vmatprep.subr.mxu0 0.0
    %385 = vmatpush1.msra.mxu0 0.0
    %386 = vmatprep.subr.mxu0 0.0
    %387 = vmatpush1.msra.mxu0 0.0
    %388 = vmatprep.mubr.f32.mxu0 0.0
    %389 = vmatmul.mubr.f32.gmra.mrb[0].mxu0 %v321
    %v390 = vpop.f32.mrb[0].mxu0
    %v391 = vadd.f32 0.0, %v390
    %v392 = vpop.f32.mrb[0].mxu0
    %393 = vdwg.mxu0
    %v394 = vadd.f32 %v323, %v391
    %v395 = vtanh.pop %v394
    %v396 = vxor.u32 %v394, 2147483648
    %v397 = vmul.f32 %v396, 1.442695
    %v398 = vpow.pop %v397
    %v399 = vadd.f32 %v398, 1.0
    %v400 = vrcp.pop %v399
    %v401 = vmul.f32 1.0, %v400
    %v402 = vsel %vm210, %v395, %v401
    %403 = vrot.lane.b32.xlu0 %v402, 96
    %v404 = vpop.permute.xlu0 %403
    %405 = vrot.lane.b32.xlu0 %v402, 64
    %v406 = vpop.permute.xlu0 %405
    %407 = vrot.lane.b32.xlu0 %v402, 32
    %v408 = vpop.permute.xlu0 %407
    %v409 = vmul.f32 %v404, %v319
    %v410 = vmul.f32 %v402, %v406
    %v411 = vadd.f32 %v409, %v410
    %v412 = vmul.f32 %v411, %v213
    %v413 = vtanh.pop %v412
    %v414 = vmul.f32 %v408, %v413
    %s415 = scalar_lea.vmem [#allocation2], 16
    %v416 = vld [vmem:[%s415] sm:$0xff]
    %417 = vmatprep.subr.mxu0 0.0
    %418 = vmatpush1.msra.mxu0 %v215
    %419 = vmatprep.subr.mxu0 0.0
    %420 = vmatpush1.msra.mxu0 %v216
    %421 = vmatprep.subr.mxu0 0.0
    %422 = vmatpush1.msra.mxu0 %v217
    %423 = vmatprep.subr.mxu0 0.0
    %424 = vmatpush1.msra.mxu0 %v218
    %425 = vmatprep.subr.mxu0 0.0
    %426 = vmatpush1.msra.mxu0 %v219
    %427 = vmatprep.subr.mxu0 0.0
    %428 = vmatpush1.msra.mxu0 %v220
    %429 = vmatprep.subr.mxu0 0.0
    %430 = vmatpush1.msra.mxu0 %v221
    %431 = vmatprep.subr.mxu0 0.0
    %432 = vmatpush1.msra.mxu0 %v222
    %433 = vmatprep.subr.mxu0 0.0
    %434 = vmatpush1.msra.mxu0 %v223
    %435 = vmatprep.subr.mxu0 0.0
    %436 = vmatpush1.msra.mxu0 %v224
    %437 = vmatprep.subr.mxu0 0.0
    %438 = vmatpush1.msra.mxu0 %v225
    %439 = vmatprep.subr.mxu0 0.0
    %440 = vmatpush1.msra.mxu0 %v226
    %441 = vmatprep.subr.mxu0 0.0
    %442 = vmatpush1.msra.mxu0 %v227
    %443 = vmatprep.subr.mxu0 0.0
    %444 = vmatpush1.msra.mxu0 %v228
    %445 = vmatprep.subr.mxu0 0.0
    %446 = vmatpush1.msra.mxu0 %v229
    %447 = vmatprep.subr.mxu0 0.0
    %448 = vmatpush1.msra.mxu0 %v230
    %449 = vmatprep.subr.mxu0 0.0
    %450 = vmatpush1.msra.mxu0 0.0
    %451 = vmatprep.subr.mxu0 0.0
    %452 = vmatpush1.msra.mxu0 0.0
    %453 = vmatprep.subr.mxu0 0.0
    %454 = vmatpush1.msra.mxu0 0.0
    %455 = vmatprep.subr.mxu0 0.0
    %456 = vmatpush1.msra.mxu0 0.0
    %457 = vmatprep.subr.mxu0 0.0
    %458 = vmatpush1.msra.mxu0 0.0
    %459 = vmatprep.subr.mxu0 0.0
    %460 = vmatpush1.msra.mxu0 0.0
    %461 = vmatprep.subr.mxu0 0.0
    %462 = vmatpush1.msra.mxu0 0.0
    %463 = vmatprep.subr.mxu0 0.0
    %464 = vmatpush1.msra.mxu0 0.0
    %465 = vmatprep.subr.mxu0 0.0
    %466 = vmatpush1.msra.mxu0 0.0
    %467 = vmatprep.subr.mxu0 0.0
    %468 = vmatpush1.msra.mxu0 0.0
    %469 = vmatprep.subr.mxu0 0.0
    %470 = vmatpush1.msra.mxu0 0.0
    %471 = vmatprep.subr.mxu0 0.0
    %472 = vmatpush1.msra.mxu0 0.0
    %473 = vmatprep.subr.mxu0 0.0
    %474 = vmatpush1.msra.mxu0 0.0
    %475 = vmatprep.subr.mxu0 0.0
    %476 = vmatpush1.msra.mxu0 0.0
    %477 = vmatprep.subr.mxu0 0.0
    %478 = vmatpush1.msra.mxu0 0.0
    %479 = vmatprep.subr.mxu0 0.0
    %480 = vmatpush1.msra.mxu0 0.0
    %481 = vmatprep.mubr.f32.mxu0 0.0
    %482 = vmatmul.mubr.f32.gmra.mrb[0].mxu0 %v414
    %v483 = vpop.f32.mrb[0].mxu0
    %v484 = vadd.f32 0.0, %v483
    %v485 = vpop.f32.mrb[0].mxu0
    %486 = vdwg.mxu0
    %v487 = vadd.f32 %v416, %v484
    %v488 = vtanh.pop %v487
    %v489 = vxor.u32 %v487, 2147483648
    %v490 = vmul.f32 %v489, 1.442695
    %v491 = vpow.pop %v490
    %v492 = vadd.f32 %v491, 1.0
    %v493 = vrcp.pop %v492
    %v494 = vmul.f32 1.0, %v493
    %v495 = vsel %vm210, %v488, %v494
    %496 = vrot.lane.b32.xlu0 %v495, 96
    %v497 = vpop.permute.xlu0 %496
    %498 = vrot.lane.b32.xlu0 %v495, 64
    %v499 = vpop.permute.xlu0 %498
    %500 = vrot.lane.b32.xlu0 %v495, 32
    %v501 = vpop.permute.xlu0 %500
    %v502 = vmul.f32 %v497, %v412
    %v503 = vmul.f32 %v495, %v499
    %v504 = vadd.f32 %v502, %v503
    %v505 = vmul.f32 %v504, %v213
    %v506 = vtanh.pop %v505
    %v507 = vmul.f32 %v501, %v506
    %s508 = scalar_lea.vmem [#allocation2], 24
    %v509 = vld [vmem:[%s508] sm:$0xff]
    %510 = vmatprep.subr.mxu0 0.0
    %511 = vmatpush1.msra.mxu0 %v215
    %512 = vmatprep.subr.mxu0 0.0
    %513 = vmatpush1.msra.mxu0 %v216
    %514 = vmatprep.subr.mxu0 0.0
    %515 = vmatpush1.msra.mxu0 %v217
    %516 = vmatprep.subr.mxu0 0.0
    %517 = vmatpush1.msra.mxu0 %v218
    %518 = vmatprep.subr.mxu0 0.0
    %519 = vmatpush1.msra.mxu0 %v219
    %520 = vmatprep.subr.mxu0 0.0
    %521 = vmatpush1.msra.mxu0 %v220
    %522 = vmatprep.subr.mxu0 0.0
    %523 = vmatpush1.msra.mxu0 %v221
    %524 = vmatprep.subr.mxu0 0.0
    %525 = vmatpush1.msra.mxu0 %v222
    %526 = vmatprep.subr.mxu0 0.0
    %527 = vmatpush1.msra.mxu0 %v223
    %528 = vmatprep.subr.mxu0 0.0
    %529 = vmatpush1.msra.mxu0 %v224
    %530 = vmatprep.subr.mxu0 0.0
    %531 = vmatpush1.msra.mxu0 %v225
    %532 = vmatprep.subr.mxu0 0.0
    %533 = vmatpush1.msra.mxu0 %v226
    %534 = vmatprep.subr.mxu0 0.0
    %535 = vmatpush1.msra.mxu0 %v227
    %536 = vmatprep.subr.mxu0 0.0
    %537 = vmatpush1.msra.mxu0 %v228
    %538 = vmatprep.subr.mxu0 0.0
    %539 = vmatpush1.msra.mxu0 %v229
    %540 = vmatprep.subr.mxu0 0.0
    %541 = vmatpush1.msra.mxu0 %v230
    %542 = vmatprep.subr.mxu0 0.0
    %543 = vmatpush1.msra.mxu0 0.0
    %544 = vmatprep.subr.mxu0 0.0
    %545 = vmatpush1.msra.mxu0 0.0
    %546 = vmatprep.subr.mxu0 0.0
    %547 = vmatpush1.msra.mxu0 0.0
    %548 = vmatprep.subr.mxu0 0.0
    %549 = vmatpush1.msra.mxu0 0.0
    %550 = vmatprep.subr.mxu0 0.0
    %551 = vmatpush1.msra.mxu0 0.0
    %552 = vmatprep.subr.mxu0 0.0
    %553 = vmatpush1.msra.mxu0 0.0
    %554 = vmatprep.subr.mxu0 0.0
    %555 = vmatpush1.msra.mxu0 0.0
    %556 = vmatprep.subr.mxu0 0.0
    %557 = vmatpush1.msra.mxu0 0.0
    %558 = vmatprep.subr.mxu0 0.0
    %559 = vmatpush1.msra.mxu0 0.0
    %560 = vmatprep.subr.mxu0 0.0
    %561 = vmatpush1.msra.mxu0 0.0
    %562 = vmatprep.subr.mxu0 0.0
    %563 = vmatpush1.msra.mxu0 0.0
    %564 = vmatprep.subr.mxu0 0.0
    %565 = vmatpush1.msra.mxu0 0.0
    %566 = vmatprep.subr.mxu0 0.0
    %567 = vmatpush1.msra.mxu0 0.0
    %568 = vmatprep.subr.mxu0 0.0
    %569 = vmatpush1.msra.mxu0 0.0
    %570 = vmatprep.subr.mxu0 0.0
    %571 = vmatpush1.msra.mxu0 0.0
    %572 = vmatprep.subr.mxu0 0.0
    %573 = vmatpush1.msra.mxu0 0.0
    %574 = vmatprep.mubr.f32.mxu0 0.0
    %575 = vmatmul.mubr.f32.gmra.mrb[0].mxu0 %v507
    %v576 = vpop.f32.mrb[0].mxu0
    %v577 = vadd.f32 0.0, %v576
    %v578 = vpop.f32.mrb[0].mxu0
    %579 = vdwg.mxu0
    %v580 = vadd.f32 %v509, %v577
    %v581 = vtanh.pop %v580
    %v582 = vxor.u32 %v580, 2147483648
    %v583 = vmul.f32 %v582, 1.442695
    %v584 = vpow.pop %v583
    %v585 = vadd.f32 %v584, 1.0
    %v586 = vrcp.pop %v585
    %v587 = vmul.f32 1.0, %v586
    %v588 = vsel %vm210, %v581, %v587
    %589 = vrot.lane.b32.xlu0 %v588, 96
    %v590 = vpop.permute.xlu0 %589
    %591 = vrot.lane.b32.xlu0 %v588, 64
    %v592 = vpop.permute.xlu0 %591
    %593 = vrot.lane.b32.xlu0 %v588, 32
    %v594 = vpop.permute.xlu0 %593
    %v595 = vmul.f32 %v590, %v505
    %v596 = vmul.f32 %v588, %v592
    %v597 = vadd.f32 %v595, %v596
    %v598 = vmul.f32 %v597, %v213
    %v599 = vtanh.pop %v598
    %v600 = vmul.f32 %v594, %v599
    %s601 = scalar_lea.vmem [#allocation2], 32
    %v602 = vld [vmem:[%s601] sm:$0xff]
    %603 = vmatprep.subr.mxu0 0.0
    %604 = vmatpush1.msra.mxu0 %v215
    %605 = vmatprep.subr.mxu0 0.0
    %606 = vmatpush1.msra.mxu0 %v216
    %607 = vmatprep.subr.mxu0 0.0
    %608 = vmatpush1.msra.mxu0 %v217
    %609 = vmatprep.subr.mxu0 0.0
    %610 = vmatpush1.msra.mxu0 %v218
    %611 = vmatprep.subr.mxu0 0.0
    %612 = vmatpush1.msra.mxu0 %v219
    %613 = vmatprep.subr.mxu0 0.0
    %614 = vmatpush1.msra.mxu0 %v220
    %615 = vmatprep.subr.mxu0 0.0
    %616 = vmatpush1.msra.mxu0 %v221
    %617 = vmatprep.subr.mxu0 0.0
    %618 = vmatpush1.msra.mxu0 %v222
    %619 = vmatprep.subr.mxu0 0.0
    %620 = vmatpush1.msra.mxu0 %v223
    %621 = vmatprep.subr.mxu0 0.0
    %622 = vmatpush1.msra.mxu0 %v224
    %623 = vmatprep.subr.mxu0 0.0
    %624 = vmatpush1.msra.mxu0 %v225
    %625 = vmatprep.subr.mxu0 0.0
    %626 = vmatpush1.msra.mxu0 %v226
    %627 = vmatprep.subr.mxu0 0.0
    %628 = vmatpush1.msra.mxu0 %v227
    %629 = vmatprep.subr.mxu0 0.0
    %630 = vmatpush1.msra.mxu0 %v228
    %631 = vmatprep.subr.mxu0 0.0
    %632 = vmatpush1.msra.mxu0 %v229
    %633 = vmatprep.subr.mxu0 0.0
    %634 = vmatpush1.msra.mxu0 %v230
    %635 = vmatprep.subr.mxu0 0.0
    %636 = vmatpush1.msra.mxu0 0.0
    %637 = vmatprep.subr.mxu0 0.0
    %638 = vmatpush1.msra.mxu0 0.0
    %639 = vmatprep.subr.mxu0 0.0
    %640 = vmatpush1.msra.mxu0 0.0
    %641 = vmatprep.subr.mxu0 0.0
    %642 = vmatpush1.msra.mxu0 0.0
    %643 = vmatprep.subr.mxu0 0.0
    %644 = vmatpush1.msra.mxu0 0.0
    %645 = vmatprep.subr.mxu0 0.0
    %646 = vmatpush1.msra.mxu0 0.0
    %647 = vmatprep.subr.mxu0 0.0
    %648 = vmatpush1.msra.mxu0 0.0
    %649 = vmatprep.subr.mxu0 0.0
    %650 = vmatpush1.msra.mxu0 0.0
    %651 = vmatprep.subr.mxu0 0.0
    %652 = vmatpush1.msra.mxu0 0.0
    %653 = vmatprep.subr.mxu0 0.0
    %654 = vmatpush1.msra.mxu0 0.0
    %655 = vmatprep.subr.mxu0 0.0
    %656 = vmatpush1.msra.mxu0 0.0
    %657 = vmatprep.subr.mxu0 0.0
    %658 = vmatpush1.msra.mxu0 0.0
    %659 = vmatprep.subr.mxu0 0.0
    %660 = vmatpush1.msra.mxu0 0.0
    %661 = vmatprep.subr.mxu0 0.0
    %662 = vmatpush1.msra.mxu0 0.0
    %663 = vmatprep.subr.mxu0 0.0
    %664 = vmatpush1.msra.mxu0 0.0
    %665 = vmatprep.subr.mxu0 0.0
    %666 = vmatpush1.msra.mxu0 0.0
    %667 = vmatprep.mubr.f32.mxu0 0.0
    %668 = vmatmul.mubr.f32.gmra.mrb[0].mxu0 %v600
    %v669 = vpop.f32.mrb[0].mxu0
    %v670 = vadd.f32 0.0, %v669
    %v671 = vpop.f32.mrb[0].mxu0
    %672 = vdwg.mxu0
    %v673 = vadd.f32 %v602, %v670
    %v674 = vtanh.pop %v673
    %v675 = vxor.u32 %v673, 2147483648
    %v676 = vmul.f32 %v675, 1.442695
    %v677 = vpow.pop %v676
    %v678 = vadd.f32 %v677, 1.0
    %v679 = vrcp.pop %v678
    %v680 = vmul.f32 1.0, %v679
    %v681 = vsel %vm210, %v674, %v680
    %682 = vrot.lane.b32.xlu0 %v681, 96
    %v683 = vpop.permute.xlu0 %682
    %684 = vrot.lane.b32.xlu0 %v681, 64
    %v685 = vpop.permute.xlu0 %684
    %686 = vrot.lane.b32.xlu0 %v681, 32
    %v687 = vpop.permute.xlu0 %686
    %v688 = vmul.f32 %v683, %v598
    %v689 = vmul.f32 %v681, %v685
    %v690 = vadd.f32 %v688, %v689
    %v691 = vmul.f32 %v690, %v213
    %v692 = vtanh.pop %v691
    %v693 = vmul.f32 %v687, %v692
    %s694 = scalar_lea.vmem [#allocation2], 40
    %v695 = vld [vmem:[%s694] sm:$0xff]
    %696 = vmatprep.subr.mxu0 0.0
    %697 = vmatpush1.msra.mxu0 %v215
    %698 = vmatprep.subr.mxu0 0.0
    %699 = vmatpush1.msra.mxu0 %v216
    %700 = vmatprep.subr.mxu0 0.0
    %701 = vmatpush1.msra.mxu0 %v217
    %702 = vmatprep.subr.mxu0 0.0
    %703 = vmatpush1.msra.mxu0 %v218
    %704 = vmatprep.subr.mxu0 0.0
    %705 = vmatpush1.msra.mxu0 %v219
    %706 = vmatprep.subr.mxu0 0.0
    %707 = vmatpush1.msra.mxu0 %v220
    %708 = vmatprep.subr.mxu0 0.0
    %709 = vmatpush1.msra.mxu0 %v221
    %710 = vmatprep.subr.mxu0 0.0
    %711 = vmatpush1.msra.mxu0 %v222
    %712 = vmatprep.subr.mxu0 0.0
    %713 = vmatpush1.msra.mxu0 %v223
    %714 = vmatprep.subr.mxu0 0.0
    %715 = vmatpush1.msra.mxu0 %v224
    %716 = vmatprep.subr.mxu0 0.0
    %717 = vmatpush1.msra.mxu0 %v225
    %718 = vmatprep.subr.mxu0 0.0
    %719 = vmatpush1.msra.mxu0 %v226
    %720 = vmatprep.subr.mxu0 0.0
    %721 = vmatpush1.msra.mxu0 %v227
    %722 = vmatprep.subr.mxu0 0.0
    %723 = vmatpush1.msra.mxu0 %v228
    %724 = vmatprep.subr.mxu0 0.0
    %725 = vmatpush1.msra.mxu0 %v229
    %726 = vmatprep.subr.mxu0 0.0
    %727 = vmatpush1.msra.mxu0 %v230
    %728 = vmatprep.subr.mxu0 0.0
    %729 = vmatpush1.msra.mxu0 0.0
    %730 = vmatprep.subr.mxu0 0.0
    %731 = vmatpush1.msra.mxu0 0.0
    %732 = vmatprep.subr.mxu0 0.0
    %733 = vmatpush1.msra.mxu0 0.0
    %734 = vmatprep.subr.mxu0 0.0
    %735 = vmatpush1.msra.mxu0 0.0
    %736 = vmatprep.subr.mxu0 0.0
    %737 = vmatpush1.msra.mxu0 0.0
    %738 = vmatprep.subr.mxu0 0.0
    %739 = vmatpush1.msra.mxu0 0.0
    %740 = vmatprep.subr.mxu0 0.0
    %741 = vmatpush1.msra.mxu0 0.0
    %742 = vmatprep.subr.mxu0 0.0
    %743 = vmatpush1.msra.mxu0 0.0
    %744 = vmatprep.subr.mxu0 0.0
    %745 = vmatpush1.msra.mxu0 0.0
    %746 = vmatprep.subr.mxu0 0.0
    %747 = vmatpush1.msra.mxu0 0.0
    %748 = vmatprep.subr.mxu0 0.0
    %749 = vmatpush1.msra.mxu0 0.0
    %750 = vmatprep.subr.mxu0 0.0
    %751 = vmatpush1.msra.mxu0 0.0
    %752 = vmatprep.subr.mxu0 0.0
    %753 = vmatpush1.msra.mxu0 0.0
    %754 = vmatprep.subr.mxu0 0.0
    %755 = vmatpush1.msra.mxu0 0.0
    %756 = vmatprep.subr.mxu0 0.0
    %757 = vmatpush1.msra.mxu0 0.0
    %758 = vmatprep.subr.mxu0 0.0
    %759 = vmatpush1.msra.mxu0 0.0
    %760 = vmatprep.mubr.f32.mxu0 0.0
    %761 = vmatmul.mubr.f32.gmra.mrb[0].mxu0 %v693
    %v762 = vpop.f32.mrb[0].mxu0
    %v763 = vadd.f32 0.0, %v762
    %v764 = vpop.f32.mrb[0].mxu0
    %765 = vdwg.mxu0
    %v766 = vadd.f32 %v695, %v763
    %v767 = vtanh.pop %v766
    %v768 = vxor.u32 %v766, 2147483648
    %v769 = vmul.f32 %v768, 1.442695
    %v770 = vpow.pop %v769
    %v771 = vadd.f32 %v770, 1.0
    %v772 = vrcp.pop %v771
    %v773 = vmul.f32 1.0, %v772
    %v774 = vsel %vm210, %v767, %v773
    %775 = vrot.lane.b32.xlu0 %v774, 96
    %v776 = vpop.permute.xlu0 %775
    %777 = vrot.lane.b32.xlu0 %v774, 64
    %v778 = vpop.permute.xlu0 %777
    %779 = vrot.lane.b32.xlu0 %v774, 32
    %v780 = vpop.permute.xlu0 %779
    %v781 = vmul.f32 %v776, %v691
    %v782 = vmul.f32 %v774, %v778
    %v783 = vadd.f32 %v781, %v782
    %v784 = vmul.f32 %v783, %v213
    %v785 = vtanh.pop %v784
    %v786 = vmul.f32 %v780, %v785
    %s787 = scalar_lea.vmem [#allocation2], 48
    %v788 = vld [vmem:[%s787] sm:$0xff]
    %789 = vmatprep.subr.mxu0 0.0
    %790 = vmatpush1.msra.mxu0 %v215
    %791 = vmatprep.subr.mxu0 0.0
    %792 = vmatpush1.msra.mxu0 %v216
    %793 = vmatprep.subr.mxu0 0.0
    %794 = vmatpush1.msra.mxu0 %v217
    %795 = vmatprep.subr.mxu0 0.0
    %796 = vmatpush1.msra.mxu0 %v218
    %797 = vmatprep.subr.mxu0 0.0
    %798 = vmatpush1.msra.mxu0 %v219
    %799 = vmatprep.subr.mxu0 0.0
    %800 = vmatpush1.msra.mxu0 %v220
    %801 = vmatprep.subr.mxu0 0.0
    %802 = vmatpush1.msra.mxu0 %v221
    %803 = vmatprep.subr.mxu0 0.0
    %804 = vmatpush1.msra.mxu0 %v222
    %805 = vmatprep.subr.mxu0 0.0
    %806 = vmatpush1.msra.mxu0 %v223
    %807 = vmatprep.subr.mxu0 0.0
    %808 = vmatpush1.msra.mxu0 %v224
    %809 = vmatprep.subr.mxu0 0.0
    %810 = vmatpush1.msra.mxu0 %v225
    %811 = vmatprep.subr.mxu0 0.0
    %812 = vmatpush1.msra.mxu0 %v226
    %813 = vmatprep.subr.mxu0 0.0
    %814 = vmatpush1.msra.mxu0 %v227
    %815 = vmatprep.subr.mxu0 0.0
    %816 = vmatpush1.msra.mxu0 %v228
    %817 = vmatprep.subr.mxu0 0.0
    %818 = vmatpush1.msra.mxu0 %v229
    %819 = vmatprep.subr.mxu0 0.0
    %820 = vmatpush1.msra.mxu0 %v230
    %821 = vmatprep.subr.mxu0 0.0
    %822 = vmatpush1.msra.mxu0 0.0
    %823 = vmatprep.subr.mxu0 0.0
    %824 = vmatpush1.msra.mxu0 0.0
    %825 = vmatprep.subr.mxu0 0.0
    %826 = vmatpush1.msra.mxu0 0.0
    %827 = vmatprep.subr.mxu0 0.0
    %828 = vmatpush1.msra.mxu0 0.0
    %829 = vmatprep.subr.mxu0 0.0
    %830 = vmatpush1.msra.mxu0 0.0
    %831 = vmatprep.subr.mxu0 0.0
    %832 = vmatpush1.msra.mxu0 0.0
    %833 = vmatprep.subr.mxu0 0.0
    %834 = vmatpush1.msra.mxu0 0.0
    %835 = vmatprep.subr.mxu0 0.0
    %836 = vmatpush1.msra.mxu0 0.0
    %837 = vmatprep.subr.mxu0 0.0
    %838 = vmatpush1.msra.mxu0 0.0
    %839 = vmatprep.subr.mxu0 0.0
    %840 = vmatpush1.msra.mxu0 0.0
    %841 = vmatprep.subr.mxu0 0.0
    %842 = vmatpush1.msra.mxu0 0.0
    %843 = vmatprep.subr.mxu0 0.0
    %844 = vmatpush1.msra.mxu0 0.0
    %845 = vmatprep.subr.mxu0 0.0
    %846 = vmatpush1.msra.mxu0 0.0
    %847 = vmatprep.subr.mxu0 0.0
    %848 = vmatpush1.msra.mxu0 0.0
    %849 = vmatprep.subr.mxu0 0.0
    %850 = vmatpush1.msra.mxu0 0.0
    %851 = vmatprep.subr.mxu0 0.0
    %852 = vmatpush1.msra.mxu0 0.0
    %853 = vmatprep.mubr.f32.mxu0 0.0
    %854 = vmatmul.mubr.f32.gmra.mrb[0].mxu0 %v786
    %v855 = vpop.f32.mrb[0].mxu0
    %v856 = vadd.f32 0.0, %v855
    %v857 = vpop.f32.mrb[0].mxu0
    %858 = vdwg.mxu0
    %v859 = vadd.f32 %v788, %v856
    %v860 = vtanh.pop %v859
    %v861 = vxor.u32 %v859, 2147483648
    %v862 = vmul.f32 %v861, 1.442695
    %v863 = vpow.pop %v862
    %v864 = vadd.f32 %v863, 1.0
    %v865 = vrcp.pop %v864
    %v866 = vmul.f32 1.0, %v865
    %v867 = vsel %vm210, %v860, %v866
    %868 = vrot.lane.b32.xlu0 %v867, 96
    %v869 = vpop.permute.xlu0 %868
    %870 = vrot.lane.b32.xlu0 %v867, 64
    %v871 = vpop.permute.xlu0 %870
    %872 = vrot.lane.b32.xlu0 %v867, 32
    %v873 = vpop.permute.xlu0 %872
    %v874 = vmul.f32 %v869, %v784
    %v875 = vmul.f32 %v867, %v871
    %v876 = vadd.f32 %v874, %v875
    %v877 = vmul.f32 %v876, %v213
    %v878 = vtanh.pop %v877
    %v879 = vmul.f32 %v873, %v878
    %s880 = scalar_lea.vmem [#allocation2], 56
    %v881 = vld [vmem:[%s880] sm:$0xff]
    %882 = vmatprep.subr.mxu0 0.0
    %883 = vmatpush1.msra.mxu0 %v215
    %884 = vmatprep.subr.mxu0 0.0
    %885 = vmatpush1.msra.mxu0 %v216
    %886 = vmatprep.subr.mxu0 0.0
    %887 = vmatpush1.msra.mxu0 %v217
    %888 = vmatprep.subr.mxu0 0.0
    %889 = vmatpush1.msra.mxu0 %v218
    %890 = vmatprep.subr.mxu0 0.0
    %891 = vmatpush1.msra.mxu0 %v219
    %892 = vmatprep.subr.mxu0 0.0
    %893 = vmatpush1.msra.mxu0 %v220
    %894 = vmatprep.subr.mxu0 0.0
    %895 = vmatpush1.msra.mxu0 %v221
    %896 = vmatprep.subr.mxu0 0.0
    %897 = vmatpush1.msra.mxu0 %v222
    %898 = vmatprep.subr.mxu0 0.0
    %899 = vmatpush1.msra.mxu0 %v223
    %900 = vmatprep.subr.mxu0 0.0
    %901 = vmatpush1.msra.mxu0 %v224
    %902 = vmatprep.subr.mxu0 0.0
    %903 = vmatpush1.msra.mxu0 %v225
    %904 = vmatprep.subr.mxu0 0.0
    %905 = vmatpush1.msra.mxu0 %v226
    %906 = vmatprep.subr.mxu0 0.0
    %907 = vmatpush1.msra.mxu0 %v227
    %908 = vmatprep.subr.mxu0 0.0
    %909 = vmatpush1.msra.mxu0 %v228
    %910 = vmatprep.subr.mxu0 0.0
    %911 = vmatpush1.msra.mxu0 %v229
    %912 = vmatprep.subr.mxu0 0.0
    %913 = vmatpush1.msra.mxu0 %v230
    %914 = vmatprep.subr.mxu0 0.0
    %915 = vmatpush1.msra.mxu0 0.0
    %916 = vmatprep.subr.mxu0 0.0
    %917 = vmatpush1.msra.mxu0 0.0
    %918 = vmatprep.subr.mxu0 0.0
    %919 = vmatpush1.msra.mxu0 0.0
    %920 = vmatprep.subr.mxu0 0.0
    %921 = vmatpush1.msra.mxu0 0.0
    %922 = vmatprep.subr.mxu0 0.0
    %923 = vmatpush1.msra.mxu0 0.0
    %924 = vmatprep.subr.mxu0 0.0
    %925 = vmatpush1.msra.mxu0 0.0
    %926 = vmatprep.subr.mxu0 0.0
    %927 = vmatpush1.msra.mxu0 0.0
    %928 = vmatprep.subr.mxu0 0.0
    %929 = vmatpush1.msra.mxu0 0.0
    %930 = vmatprep.subr.mxu0 0.0
    %931 = vmatpush1.msra.mxu0 0.0
    %932 = vmatprep.subr.mxu0 0.0
    %933 = vmatpush1.msra.mxu0 0.0
    %934 = vmatprep.subr.mxu0 0.0
    %935 = vmatpush1.msra.mxu0 0.0
    %936 = vmatprep.subr.mxu0 0.0
    %937 = vmatpush1.msra.mxu0 0.0
    %938 = vmatprep.subr.mxu0 0.0
    %939 = vmatpush1.msra.mxu0 0.0
    %940 = vmatprep.subr.mxu0 0.0
    %941 = vmatpush1.msra.mxu0 0.0
    %942 = vmatprep.subr.mxu0 0.0
    %943 = vmatpush1.msra.mxu0 0.0
    %944 = vmatprep.subr.mxu0 0.0
    %945 = vmatpush1.msra.mxu0 0.0
    %946 = vmatprep.mubr.f32.mxu0 0.0
    %947 = vmatmul.mubr.f32.gmra.mrb[0].mxu0 %v879
    %v948 = vpop.f32.mrb[0].mxu0
    %v949 = vadd.f32 0.0, %v948
    %v950 = vpop.f32.mrb[0].mxu0
    %951 = vdwg.mxu0
    %v952 = vadd.f32 %v881, %v949
    %v953 = vtanh.pop %v952
    %v954 = vxor.u32 %v952, 2147483648
    %v955 = vmul.f32 %v954, 1.442695
    %v956 = vpow.pop %v955
    %v957 = vadd.f32 %v956, 1.0
    %v958 = vrcp.pop %v957
    %v959 = vmul.f32 1.0, %v958
    %v960 = vsel %vm210, %v953, %v959
    %961 = vrot.lane.b32.xlu0 %v960, 96
    %v962 = vpop.permute.xlu0 %961
    %963 = vrot.lane.b32.xlu0 %v960, 64
    %v964 = vpop.permute.xlu0 %963
    %965 = vrot.lane.b32.xlu0 %v960, 32
    %v966 = vpop.permute.xlu0 %965
    %v967 = vmul.f32 %v962, %v877
    %v968 = vmul.f32 %v960, %v964
    %v969 = vadd.f32 %v967, %v968
    %v970 = vmul.f32 %v969, %v213
    %v971 = vtanh.pop %v970
    %v972 = vmul.f32 %v966, %v971
    %v973 = vld [vmem:[%s4] sm:$0xff]
    %v974 = vld [vmem:[%s4 + $0x8] sm:$0xff]
    %v975 = vld [vmem:[%s4 + $0x10] sm:$0xff]
    %v976 = vld [vmem:[%s4 + $0x18] sm:$0xff]
    %v977 = vld [vmem:[%s4 + $0x20] sm:$0xff]
    %v978 = vld [vmem:[%s4 + $0x28] sm:$0xff]
    %v979 = vld [vmem:[%s4 + $0x30] sm:$0xff]
    %v980 = vld [vmem:[%s4 + $0x38] sm:$0xff]
    %v981 = vld [vmem:[%s4 + $0x40] sm:$0xff]
    %v982 = vld [vmem:[%s4 + $0x48] sm:$0xff]
    %v983 = vld [vmem:[%s4 + $0x50] sm:$0xff]
    %v984 = vld [vmem:[%s4 + $0x58] sm:$0xff]
    %v985 = vld [vmem:[%s4 + $0x60] sm:$0xff]
    %v986 = vld [vmem:[%s4 + $0x68] sm:$0xff]
    %v987 = vld [vmem:[%s4 + $0x70] sm:$0xff]
    %v988 = vld [vmem:[%s4 + $0x78] sm:$0xff]
    %v989 = vld [vmem:[%s5] sm:$0x1]
    %v991 = vlaneseq
    %v992 = vshrl.u32 %v991, 7
    %v993 = vsub.s32 0, %v992
    %v994 = vrot.slane %v989, %v993
    %996 = vmatprep.subr.mxu0 0.0
    %997 = vmatpush1.msra.mxu0 %v973
    %998 = vmatprep.subr.mxu0 0.0
    %999 = vmatpush1.msra.mxu0 %v974
    %1000 = vmatprep.subr.mxu0 0.0
    %1001 = vmatpush1.msra.mxu0 %v975
    %1002 = vmatprep.subr.mxu0 0.0
    %1003 = vmatpush1.msra.mxu0 %v976
    %1004 = vmatprep.subr.mxu0 0.0
    %1005 = vmatpush1.msra.mxu0 %v977
    %1006 = vmatprep.subr.mxu0 0.0
    %1007 = vmatpush1.msra.mxu0 %v978
    %1008 = vmatprep.subr.mxu0 0.0
    %1009 = vmatpush1.msra.mxu0 %v979
    %1010 = vmatprep.subr.mxu0 0.0
    %1011 = vmatpush1.msra.mxu0 %v980
    %1012 = vmatprep.subr.mxu0 0.0
    %1013 = vmatpush1.msra.mxu0 %v981
    %1014 = vmatprep.subr.mxu0 0.0
    %1015 = vmatpush1.msra.mxu0 %v982
    %1016 = vmatprep.subr.mxu0 0.0
    %1017 = vmatpush1.msra.mxu0 %v983
    %1018 = vmatprep.subr.mxu0 0.0
    %1019 = vmatpush1.msra.mxu0 %v984
    %1020 = vmatprep.subr.mxu0 0.0
    %1021 = vmatpush1.msra.mxu0 %v985
    %1022 = vmatprep.subr.mxu0 0.0
    %1023 = vmatpush1.msra.mxu0 %v986
    %1024 = vmatprep.subr.mxu0 0.0
    %1025 = vmatpush1.msra.mxu0 %v987
    %1026 = vmatprep.subr.mxu0 0.0
    %1027 = vmatpush1.msra.mxu0 %v988
    %1028 = vmatprep.subr.mxu0 0.0
    %1029 = vmatpush1.msra.mxu0 0.0
    %1030 = vmatprep.subr.mxu0 0.0
    %1031 = vmatpush1.msra.mxu0 0.0
    %1032 = vmatprep.subr.mxu0 0.0
    %1033 = vmatpush1.msra.mxu0 0.0
    %1034 = vmatprep.subr.mxu0 0.0
    %1035 = vmatpush1.msra.mxu0 0.0
    %1036 = vmatprep.subr.mxu0 0.0
    %1037 = vmatpush1.msra.mxu0 0.0
    %1038 = vmatprep.subr.mxu0 0.0
    %1039 = vmatpush1.msra.mxu0 0.0
    %1040 = vmatprep.subr.mxu0 0.0
    %1041 = vmatpush1.msra.mxu0 0.0
    %1042 = vmatprep.subr.mxu0 0.0
    %1043 = vmatpush1.msra.mxu0 0.0
    %1044 = vmatprep.subr.mxu0 0.0
    %1045 = vmatpush1.msra.mxu0 0.0
    %1046 = vmatprep.subr.mxu0 0.0
    %1047 = vmatpush1.msra.mxu0 0.0
    %1048 = vmatprep.subr.mxu0 0.0
    %1049 = vmatpush1.msra.mxu0 0.0
    %1050 = vmatprep.subr.mxu0 0.0
    %1051 = vmatpush1.msra.mxu0 0.0
    %1052 = vmatprep.subr.mxu0 0.0
    %1053 = vmatpush1.msra.mxu0 0.0
    %1054 = vmatprep.subr.mxu0 0.0
    %1055 = vmatpush1.msra.mxu0 0.0
    %1056 = vmatprep.subr.mxu0 0.0
    %1057 = vmatpush1.msra.mxu0 0.0
    %1058 = vmatprep.subr.mxu0 0.0
    %1059 = vmatpush1.msra.mxu0 0.0
    %1060 = vmatprep.mubr.f32.mxu0 0.0
    %1061 = vmatmul.mubr.f32.gmra.mrb[0].mxu0 %v972
    %v1062 = vpop.f32.mrb[0].mxu0
    %v1063 = vadd.f32 %v994, %v1062
    %v1064 = vpop.f32.mrb[0].mxu0
    %1065 = vdwg.mxu0
    %1066 = vst [vmem:[%s6] sm:$0xff] %v1063
    // Predicated region
    $region34: #{forward.1} parent=1 // pred_check
      _
    $region35: #{forward.1} parent=1 // pred_check_branch
      %1068 = sbr.rel (0) target = $region37
    $region36: #{forward.1} parent=1 // pred_region
      _
    $region37: #{forward.1} parent=1 // pred_fallthru
      _
    // Predicated region
    $region38: #{forward.1} parent=1 // pred_check
      _
    $region39: #{forward.1} parent=1 // pred_check_branch
      %1070 = sbr.rel (0) target = $region41
    $region40: #{forward.1} parent=1 // pred_region
      _
    $region41: #{forward.1} parent=1 // pred_fallthru
      _
    %1071 = vsyncpa [#allocation4], 1
    %1072 = vsyncpa [#allocation6], 1

</llo_original>
